<compile_context>
chip_gen: v7x
topology: tpu7x:2x2x1
jax: 0.10.0
libtpu: 0.0.40
codegen_flags: <defaults>
</compile_context>

<pallas_src>
import functools
import math

import jax
import jax.numpy as jnp
from jax import lax
from jax.experimental import pallas as pl
from jax.experimental.pallas import tpu as pltpu


def _round_up(x, m):
    return ((x + m - 1) // m) * m


def _sigmoid(x):
    # sigmoid(x) == 0.5 * (tanh(0.5 * x) + 1): one EUP tanh instead of exp + reciprocal.
    return 0.5 * (jnp.tanh(0.5 * x) + 1.0)


def _lstm_chunk_kernel(x_ref, h0_ref, c0_ref, w_ih_ref, w_hh_ref, b_ref,
                       y_ref, cn_ref,
                       p_scratch, h_scratch, c_scratch,
                       *, hidden, unroll, mm_dtype):
    """One (batch-tile, time-chunk) block of the LSTM.

    x_ref:    (Tc, Bt, Ip)  input chunk (streamed)
    h0/c0:    (Bt, Hp)      initial state (single-buffered)
    w_ih_ref: (Ip, 4Hp)     input weight, transposed + gate-block padded (resident)
    w_hh_ref: (Hp, 4Hp)     recurrent weight, transposed + gate-block padded (resident)
    b_ref:    (1, 4Hp)      b_ih + b_hh, gate-block padded (resident)
    y_ref:    (Tc, Bt, Hp)  h_t for every step in the chunk
    cn_ref:   (Bt, Hp)      final cell state (written on the last time chunk)
    """
    t_chunk = pl.program_id(1)
    n_chunks = pl.num_programs(1)
    Tc, Bt, Ip = x_ref.shape
    Hp = hidden

    # Recurrent state lives in VMEM scratch *between* time chunks only; within a chunk it
    # is carried in vregs by the fori_loop below.
    @pl.when(t_chunk == 0)
    def _():
        h_scratch[...] = h0_ref[...].astype(jnp.float32)
        c_scratch[...] = c0_ref[...].astype(jnp.float32)

    # ---- Per-chunk input projection: one big MXU GEMM, no recurrent dependency. ----
    # (Merging the leading T and B dims is layout-preserving: Bt is a multiple of 8,
    #  Ip a multiple of 128.)
    x2 = x_ref[...].astype(mm_dtype).reshape(Tc * Bt, Ip)
    p = jnp.dot(x2, w_ih_ref[...], preferred_element_type=jnp.float32)
    p = p + b_ref[...].astype(jnp.float32)
    p_scratch[...] = p.reshape(Tc, Bt, 4 * Hp)

    w_hh = w_hh_ref[...]  # resident, single-buffered

    def step(t, carry):
        h, c = carry  # vreg-carried f32 state
        # Only the recurrent matmul is on the serial chain.
        gates = p_scratch[t] + jnp.dot(h.astype(mm_dtype), w_hh,
                                       preferred_element_type=jnp.float32)
        # PyTorch gate order [i, f, g, o]; Hp is a multiple of 128 -> lane-aligned slices.
        i_g = _sigmoid(gates[:, 0 * Hp:1 * Hp])
        f_g = _sigmoid(gates[:, 1 * Hp:2 * Hp])
        g_g = jnp.tanh(gates[:, 2 * Hp:3 * Hp])
        o_g = _sigmoid(gates[:, 3 * Hp:4 * Hp])
        c_new = f_g * c + i_g * g_g
        h_new = o_g * jnp.tanh(c_new)
        y_ref[t] = h_new.astype(y_ref.dtype)  # VMEM store; HBM writeback is one chunk DMA
        return (h_new, c_new)

    h_fin, c_fin = lax.fori_loop(0, Tc, step,
                                 (h_scratch[...], c_scratch[...]),
                                 unroll=unroll)

    # Persist state once per chunk for the next time chunk of this batch tile.
    h_scratch[...] = h_fin
    c_scratch[...] = c_fin

    @pl.when(t_chunk == n_chunks - 1)
    def _():
        cn_ref[...] = c_fin.astype(cn_ref.dtype)


def decoder_lstm_forward(x, last_hidden, params, *,
                         batch_tile=None, time_chunk=None,
                         use_bf16_matmul=False,
                         vmem_budget_bytes=48 * 1024 * 1024):
    """Pallas implementation of DecoderLSTM.forward (single-layer nn.LSTM).

    x:           (T, B, I)  float32   (batch_first=False)
    last_hidden: tuple (h0, c0), each (1, B, H)
    params:      dict with 'w_ih' (4H, I), 'w_hh' (4H, H), 'b_ih' (4H,), 'b_hh' (4H,)
    Returns (outputs, (h_n, c_n), None) mirroring the PyTorch module.
    """
    h0, c0 = last_hidden
    T, B, I = x.shape
    H = h0.shape[-1]

    # Lane/sublane-dense padded sizes.  Zero padding is exact for the LSTM recurrence
    # (padded lanes stay at 0) and is sliced off below.
    Hp = _round_up(H, 128)
    Ip = _round_up(I, 128)
    Bp = _round_up(B, 8)

    mm_dtype = jnp.bfloat16 if use_bf16_matmul else jnp.float32

    # ---- Weight preparation: transpose + pad each gate block [i, f, g, o] to Hp. ----
    def pad_gate_weight(w, in_dim, in_pad):
        w4 = w.reshape(4, H, in_dim).astype(jnp.float32)
        w4 = jnp.pad(w4, ((0, 0), (0, Hp - H), (0, in_pad - in_dim)))
        return jnp.transpose(w4, (2, 0, 1)).reshape(in_pad, 4 * Hp).astype(mm_dtype)

    w_ih_t = pad_gate_weight(params["w_ih"], I, Ip)   # (Ip, 4Hp)
    w_hh_t = pad_gate_weight(params["w_hh"], H, Hp)   # (Hp, 4Hp)
    bias = (params["b_ih"] + params["b_hh"]).astype(jnp.float32).reshape(4, H)
    bias = jnp.pad(bias, ((0, 0), (0, Hp - H))).reshape(1, 4 * Hp)

    x_p = jnp.pad(x, ((0, 0), (0, Bp - B), (0, Ip - I))).astype(mm_dtype)
    h0_p = jnp.pad(h0.reshape(B, H).astype(jnp.float32), ((0, Bp - B), (0, Hp - H)))
    c0_p = jnp.pad(c0.reshape(B, H).astype(jnp.float32), ((0, Bp - B), (0, Hp - H)))

    # ---- Tile selection. ----
    if batch_tile is None:
        bt = Bp
        # Large batches: split into 2 tiles so v7x's two TensorCores both get work,
        # keeping per-core matmul rows >= 128.
        if Bp >= 256 and (Bp // 2) % 8 == 0:
            bt = Bp // 2
    else:
        bt = batch_tile
    assert Bp % bt == 0 and bt % 8 == 0, "batch tile must divide padded B and be a multiple of 8"
    n_bt = Bp // bt

    mm_bytes = jnp.dtype(mm_dtype).itemsize

    def chunk_vmem(tc):
        return (2 * tc * bt * Ip * mm_bytes      # x chunk (double-buffered)
                + 2 * tc * bt * Hp * 4           # y chunk (double-buffered)
                + tc * bt * 4 * Hp * 4           # P scratch
                + Ip * 4 * Hp * mm_bytes         # W_ih^T (single-buffered)
                + Hp * 4 * Hp * mm_bytes         # W_hh^T (single-buffered)
                + 4 * Hp * 4                     # bias
                + 4 * bt * Hp * 4)               # h0/c0 + h/c scratch

    if time_chunk is None:
        tchunk = T
        while tchunk > 1 and (T % tchunk != 0 or chunk_vmem(tchunk) > vmem_budget_bytes):
            tchunk -= 1
    else:
        tchunk = time_chunk
    assert T % tchunk == 0, "time_chunk must divide T"
    n_tc = T // tchunk

    vmem_limit = int(min(112 * 1024 * 1024,
                         max(32 * 1024 * 1024, chunk_vmem(tchunk) * 1.4)))

    # Cap the unroll so the unrolled body (one (bt, 4Hp) gates value + h/c live per step)
    # does not spill the 64-entry vreg file.
    unroll = max(1, min(8, tchunk))

    kernel = functools.partial(_lstm_chunk_kernel,
                               hidden=Hp, unroll=unroll, mm_dtype=mm_dtype)

    resident = pl.Buffered(1)  # single-buffer constant-index operands (no wasted 2nd buffer)

    outputs_p, c_n_p = pl.pallas_call(
        kernel,
        out_shape=(
            jax.ShapeDtypeStruct((T, Bp, Hp), x.dtype),   # outputs (h_t for all t)
            jax.ShapeDtypeStruct((Bp, Hp), x.dtype),      # c_n
        ),
        grid_spec=pltpu.PrefetchScalarGridSpec(
            num_scalar_prefetch=0,
            grid=(n_bt, n_tc),
            in_specs=[
                pl.BlockSpec((tchunk, bt, Ip), lambda b, t: (t, b, 0)),                         # x chunk
                pl.BlockSpec((bt, Hp), lambda b, t: (b, 0), pipeline_mode=resident),            # h0
                pl.BlockSpec((bt, Hp), lambda b, t: (b, 0), pipeline_mode=resident),            # c0
                pl.BlockSpec((Ip, 4 * Hp), lambda b, t: (0, 0), pipeline_mode=resident),        # W_ih^T
                pl.BlockSpec((Hp, 4 * Hp), lambda b, t: (0, 0), pipeline_mode=resident),        # W_hh^T
                pl.BlockSpec((1, 4 * Hp), lambda b, t: (0, 0), pipeline_mode=resident),         # bias
            ],
            out_specs=[
                pl.BlockSpec((tchunk, bt, Hp), lambda b, t: (t, b, 0)),                         # outputs
                pl.BlockSpec((bt, Hp), lambda b, t: (b, 0)),                                    # c_n
            ],
            scratch_shapes=[
                pltpu.VMEM((tchunk, bt, 4 * Hp), jnp.float32),  # per-chunk P = x@W_ih^T + b
                pltpu.VMEM((bt, Hp), jnp.float32),              # carried h (across time chunks)
                pltpu.VMEM((bt, Hp), jnp.float32),              # carried c (across time chunks)
            ],
        ),
        compiler_params=pltpu.CompilerParams(
            # Batch tiles are independent -> parallel (sharded across v7x's 2 TCs);
            # time carries the recurrent state -> arbitrary.  Do NOT reorder these axes.
            dimension_semantics=("parallel", "arbitrary"),
            vmem_limit_bytes=vmem_limit,
        ),
    )(x_p, h0_p, c0_p, w_ih_t, w_hh_t, bias)

    outputs = outputs_p[:, :B, :H]
    h_n = outputs[T - 1:T]                 # h_n == last output step; no extra kernel output
    c_n = c_n_p[:B, :H].reshape(1, B, H)
    # TODO(synk): inter-layer dropout is a no-op for n_layers=1 (matches nn.LSTM behavior).
    return outputs, (h_n, c_n), None


def init_params(key, input_size, hidden_size):
    """Deterministic init matching nn.LSTM's uniform(-1/sqrt(H), 1/sqrt(H))."""
    k = 1.0 / math.sqrt(hidden_size)
    ks = jax.random.split(key, 4)
    w_ih = jax.random.uniform(ks[0], (4 * hidden_size, input_size), jnp.float32, -k, k)
    w_hh = jax.random.uniform(ks[1], (4 * hidden_size, hidden_size), jnp.float32, -k, k)
    b_ih = jax.random.uniform(ks[2], (4 * hidden_size,), jnp.float32, -k, k)
    b_hh = jax.random.uniform(ks[3], (4 * hidden_size,), jnp.float32, -k, k)
    return {"w_ih": w_ih, "w_hh": w_hh, "b_ih": b_ih, "b_hh": b_hh}


def _reference_lstm(x, h0, c0, params):
    """Pure-JAX reference (same math as PyTorch nn.LSTM) for a sanity check."""
    w_ih, w_hh = params["w_ih"], params["w_hh"]
    b = params["b_ih"] + params["b_hh"]
    H = h0.shape[-1]

    def step(carry, x_t):
        h, c = carry
        gates = x_t @ w_ih.T + h @ w_hh.T + b
        i = jax.nn.sigmoid(gates[:, 0 * H:1 * H])
        f = jax.nn.sigmoid(gates[:, 1 * H:2 * H])
        g = jnp.tanh(gates[:, 2 * H:3 * H])
        o = jax.nn.sigmoid(gates[:, 3 * H:4 * H])
        c_new = f * c + i * g
        h_new = o * jnp.tanh(c_new)
        return (h_new, c_new), h_new

    (h_n, c_n), ys = jax.lax.scan(step, (h0[0], c0[0]), x)
    return ys, h_n[None], c_n[None]


if __name__ == "__main__":
    # Small shapes consistent with the module: hidden_size (input dim) = 32,
    # output_size (LSTM hidden) = 32, seq = 8, batch = 4, n_layers = 1.
    SEQ, BATCH, IN_SIZE, OUT_SIZE = 8, 4, 32, 32

    key = jax.random.PRNGKey(0)
    k_x, k_h, k_c, k_p = jax.random.split(key, 4)

    x = jax.random.normal(k_x, (SEQ, BATCH, IN_SIZE), jnp.float32)
    h0 = jax.random.normal(k_h, (1, BATCH, OUT_SIZE), jnp.float32)
    c0 = jax.random.normal(k_c, (1, BATCH, OUT_SIZE), jnp.float32)
    params = init_params(k_p, IN_SIZE, OUT_SIZE)

    outputs, (h_n, c_n), attn = decoder_lstm_forward(x, (h0, c0), params)
    jax.block_until_ready((outputs, h_n, c_n))

    # Correctness check against pure-JAX reference.
    ref_y, ref_h, ref_c = _reference_lstm(x, h0, c0, params)
    assert jnp.allclose(outputs, ref_y, atol=1e-5, rtol=1e-5), \
        float(jnp.max(jnp.abs(outputs - ref_y)))
    assert jnp.allclose(h_n, ref_h, atol=1e-5, rtol=1e-5)
    assert jnp.allclose(c_n, ref_c, atol=1e-5, rtol=1e-5)
    assert attn is None

    print("KERNEL_OK")
</pallas_src>

<mosaic_0001>
module attributes {stable_mosaic.version = 11 : i64} {
  func.func @_lstm_chunk_kernel(%arg0: i32, %arg1: i32, %arg2: memref<8x8x128xf32, #tpu.memory_space<vmem>>, %arg3: memref<8x128xf32, #tpu.memory_space<vmem>>, %arg4: memref<8x128xf32, #tpu.memory_space<vmem>>, %arg5: memref<128x512xf32, #tpu.memory_space<vmem>>, %arg6: memref<128x512xf32, #tpu.memory_space<vmem>>, %arg7: memref<1x512xf32, #tpu.memory_space<vmem>>, %arg8: memref<8x8x128xf32, #tpu.memory_space<vmem>>, %arg9: memref<8x128xf32, #tpu.memory_space<vmem>>, %arg10: memref<8x8x512xf32, #tpu.memory_space<vmem>>, %arg11: memref<8x128xf32, #tpu.memory_space<vmem>>, %arg12: memref<8x128xf32, #tpu.memory_space<vmem>>) attributes {dimension_semantics = [#tpu.dimension_semantics<parallel>, #tpu.dimension_semantics<arbitrary>], iteration_bounds = array<i64: 1, 1>, scalar_prefetch = 0 : i64, scratch_operands = 3 : i64, tpu.core_type = #tpu.core_type<tc>, window_params = [{transform_indices = @transform_0, window_bounds = array<i64: 8, 8, 128>}, {pipeline_mode = #tpu.pipeline_mode<synchronous>, transform_indices = @transform_1, window_bounds = array<i64: 8, 128>}, {pipeline_mode = #tpu.pipeline_mode<synchronous>, transform_indices = @transform_2, window_bounds = array<i64: 8, 128>}, {pipeline_mode = #tpu.pipeline_mode<synchronous>, transform_indices = @transform_3, window_bounds = array<i64: 128, 512>}, {pipeline_mode = #tpu.pipeline_mode<synchronous>, transform_indices = @transform_4, window_bounds = array<i64: 128, 512>}, {pipeline_mode = #tpu.pipeline_mode<synchronous>, transform_indices = @transform_5, window_bounds = array<i64: 1, 512>}, {transform_indices = @transform_6, window_bounds = array<i64: 8, 8, 128>}, {transform_indices = @transform_7, window_bounds = array<i64: 8, 128>}]} {
    %c0_i32 = arith.constant 0 : i32
    %0 = arith.cmpi eq, %arg1, %c0_i32 : i32
    %1 = arith.extui %0 : i1 to i32
    %c0_i32_0 = arith.constant 0 : i32
    %2 = arith.cmpi ne, %1, %c0_i32_0 : i32
    scf.if %2 {
      %c0_135 = arith.constant 0 : index
      %c0_136 = arith.constant 0 : index
      %340 = vector.load %arg3[%c0_135, %c0_136] : memref<8x128xf32, #tpu.memory_space<vmem>>, vector<8x128xf32>
      %c0_137 = arith.constant 0 : index
      %c0_138 = arith.constant 0 : index
      %341 = vector.load %arg11[%c0_137, %c0_138] : memref<8x128xf32, #tpu.memory_space<vmem>>, vector<8x128xf32>
      tpu.vector_store %arg11[%c0_137, %c0_138], %340 {strides = array<i32>} : memref<8x128xf32, #tpu.memory_space<vmem>>, vector<8x128xf32>,
      %c0_139 = arith.constant 0 : index
      %c0_140 = arith.constant 0 : index
      %342 = vector.load %arg4[%c0_139, %c0_140] : memref<8x128xf32, #tpu.memory_space<vmem>>, vector<8x128xf32>
      %c0_141 = arith.constant 0 : index
      %c0_142 = arith.constant 0 : index
      %343 = vector.load %arg12[%c0_141, %c0_142] : memref<8x128xf32, #tpu.memory_space<vmem>>, vector<8x128xf32>
      tpu.vector_store %arg12[%c0_141, %c0_142], %342 {strides = array<i32>} : memref<8x128xf32, #tpu.memory_space<vmem>>, vector<8x128xf32>,
    } else {
    }
    %c0 = arith.constant 0 : index
    %c0_1 = arith.constant 0 : index
    %c0_2 = arith.constant 0 : index
    %3 = vector.load %arg2[%c0, %c0_1, %c0_2] : memref<8x8x128xf32, #tpu.memory_space<vmem>>, vector<8x8x128xf32>
    %4 = vector.shape_cast %3 : vector<8x8x128xf32> to vector<64x128xf32>
    %c0_3 = arith.constant 0 : index
    %c0_4 = arith.constant 0 : index
    %5 = vector.load %arg5[%c0_3, %c0_4] : memref<128x512xf32, #tpu.memory_space<vmem>>, vector<128x512xf32>
    %cst = arith.constant dense<0.000000e+00> : vector<64x512xf32>
    %6 = tpu.matmul %4, %5, %cst {dimension_numbers = #tpu.dot_dimension_numbers<[1], [0], [0], [1], [0, 0, 1, 1], [], []>} : vector<64x128xf32>, vector<128x512xf32>, vector<64x512xf32> -> vector<64x512xf32>
    %c0_5 = arith.constant 0 : index
    %c0_6 = arith.constant 0 : index
    %7 = vector.load %arg7[%c0_5, %c0_6] : memref<1x512xf32, #tpu.memory_space<vmem>>, vector<1x512xf32>
    %8 = vector.broadcast %7 : vector<1x512xf32> to vector<64x512xf32>
    %9 = arith.addf %6, %8 : vector<64x512xf32>
    %10 = vector.shape_cast %9 : vector<64x512xf32> to vector<8x8x512xf32>
    %c0_7 = arith.constant 0 : index
    %c0_8 = arith.constant 0 : index
    %c0_9 = arith.constant 0 : index
    %11 = vector.load %arg10[%c0_7, %c0_8, %c0_9] : memref<8x8x512xf32, #tpu.memory_space<vmem>>, vector<8x8x512xf32>
    tpu.vector_store %arg10[%c0_7, %c0_8, %c0_9], %10 {strides = array<i32>} : memref<8x8x512xf32, #tpu.memory_space<vmem>>, vector<8x8x512xf32>,
    %c0_10 = arith.constant 0 : index
    %c0_11 = arith.constant 0 : index
    %12 = vector.load %arg6[%c0_10, %c0_11] : memref<128x512xf32, #tpu.memory_space<vmem>>, vector<128x512xf32>
    %c0_12 = arith.constant 0 : index
    %c0_13 = arith.constant 0 : index
    %13 = vector.load %arg11[%c0_12, %c0_13] : memref<8x128xf32, #tpu.memory_space<vmem>>, vector<8x128xf32>
    %c0_14 = arith.constant 0 : index
    %c0_15 = arith.constant 0 : index
    %14 = vector.load %arg12[%c0_14, %c0_15] : memref<8x128xf32, #tpu.memory_space<vmem>>, vector<8x128xf32>
    %c0_i32_16 = arith.constant 0 : i32
    %15 = arith.index_cast %c0_i32_16 : i32 to index
    %c0_17 = arith.constant 0 : index
    %c0_18 = arith.constant 0 : index
    %16 = vector.load %arg10[%15, %c0_17, %c0_18] : memref<8x8x512xf32, #tpu.memory_space<vmem>>, vector<1x8x512xf32>
    %17 = vector.shape_cast %16 : vector<1x8x512xf32> to vector<8x512xf32>
    %cst_19 = arith.constant dense<0.000000e+00> : vector<8x512xf32>
    %18 = tpu.matmul %13, %12, %cst_19 {dimension_numbers = #tpu.dot_dimension_numbers<[1], [0], [0], [1], [0, 0, 1, 1], [], []>} : vector<8x128xf32>, vector<128x512xf32>, vector<8x512xf32> -> vector<8x512xf32>
    %19 = arith.addf %17, %18 : vector<8x512xf32>
    %20 = vector.extract_strided_slice %19 {offsets = [0, 0], sizes = [8, 128], strides = [1, 1]} : vector<8x512xf32> to vector<8x128xf32>
    %cst_20 = arith.constant 5.000000e-01 : f32
    %21 = vector.broadcast %cst_20 : f32 to vector<8x128xf32>
    %22 = arith.mulf %21, %20 : vector<8x128xf32>
    %23 = math.tanh %22 : vector<8x128xf32>
    %cst_21 = arith.constant 1.000000e+00 : f32
    %24 = vector.broadcast %cst_21 : f32 to vector<8x128xf32>
    %25 = arith.addf %23, %24 : vector<8x128xf32>
    %cst_22 = arith.constant 5.000000e-01 : f32
    %26 = vector.broadcast %cst_22 : f32 to vector<8x128xf32>
    %27 = arith.mulf %26, %25 : vector<8x128xf32>
    %28 = vector.extract_strided_slice %19 {offsets = [0, 128], sizes = [8, 128], strides = [1, 1]} : vector<8x512xf32> to vector<8x128xf32>
    %cst_23 = arith.constant 5.000000e-01 : f32
    %29 = vector.broadcast %cst_23 : f32 to vector<8x128xf32>
    %30 = arith.mulf %29, %28 : vector<8x128xf32>
    %31 = math.tanh %30 : vector<8x128xf32>
    %cst_24 = arith.constant 1.000000e+00 : f32
    %32 = vector.broadcast %cst_24 : f32 to vector<8x128xf32>
    %33 = arith.addf %31, %32 : vector<8x128xf32>
    %cst_25 = arith.constant 5.000000e-01 : f32
    %34 = vector.broadcast %cst_25 : f32 to vector<8x128xf32>
    %35 = arith.mulf %34, %33 : vector<8x128xf32>
    %36 = vector.extract_strided_slice %19 {offsets = [0, 256], sizes = [8, 128], strides = [1, 1]} : vector<8x512xf32> to vector<8x128xf32>
    %37 = math.tanh %36 : vector<8x128xf32>
    %38 = vector.extract_strided_slice %19 {offsets = [0, 384], sizes = [8, 128], strides = [1, 1]} : vector<8x512xf32> to vector<8x128xf32>
    %cst_26 = arith.constant 5.000000e-01 : f32
    %39 = vector.broadcast %cst_26 : f32 to vector<8x128xf32>
    %40 = arith.mulf %39, %38 : vector<8x128xf32>
    %41 = math.tanh %40 : vector<8x128xf32>
    %cst_27 = arith.constant 1.000000e+00 : f32
    %42 = vector.broadcast %cst_27 : f32 to vector<8x128xf32>
    %43 = arith.addf %41, %42 : vector<8x128xf32>
    %cst_28 = arith.constant 5.000000e-01 : f32
    %44 = vector.broadcast %cst_28 : f32 to vector<8x128xf32>
    %45 = arith.mulf %44, %43 : vector<8x128xf32>
    %46 = arith.mulf %35, %14 : vector<8x128xf32>
    %47 = arith.mulf %27, %37 : vector<8x128xf32>
    %48 = arith.addf %46, %47 : vector<8x128xf32>
    %49 = math.tanh %48 : vector<8x128xf32>
    %50 = arith.mulf %45, %49 : vector<8x128xf32>
    %51 = arith.index_cast %c0_i32_16 : i32 to index
    %c0_29 = arith.constant 0 : index
    %c0_30 = arith.constant 0 : index
    %52 = vector.load %arg8[%51, %c0_29, %c0_30] : memref<8x8x128xf32, #tpu.memory_space<vmem>>, vector<1x8x128xf32>
    %53 = vector.shape_cast %52 : vector<1x8x128xf32> to vector<8x128xf32>
    %54 = vector.shape_cast %50 : vector<8x128xf32> to vector<1x8x128xf32>
    tpu.vector_store %arg8[%51, %c0_29, %c0_30], %54 {strides = array<i32>} : memref<8x8x128xf32, #tpu.memory_space<vmem>>, vector<1x8x128xf32>,
    %c1_i32 = arith.constant 1 : i32
    %55 = arith.index_cast %c1_i32 : i32 to index
    %c0_31 = arith.constant 0 : index
    %c0_32 = arith.constant 0 : index
    %56 = vector.load %arg10[%55, %c0_31, %c0_32] : memref<8x8x512xf32, #tpu.memory_space<vmem>>, vector<1x8x512xf32>
    %57 = vector.shape_cast %56 : vector<1x8x512xf32> to vector<8x512xf32>
    %cst_33 = arith.constant dense<0.000000e+00> : vector<8x512xf32>
    %58 = tpu.matmul %50, %12, %cst_33 {dimension_numbers = #tpu.dot_dimension_numbers<[1], [0], [0], [1], [0, 0, 1, 1], [], []>} : vector<8x128xf32>, vector<128x512xf32>, vector<8x512xf32> -> vector<8x512xf32>
    %59 = arith.addf %57, %58 : vector<8x512xf32>
    %60 = vector.extract_strided_slice %59 {offsets = [0, 0], sizes = [8, 128], strides = [1, 1]} : vector<8x512xf32> to vector<8x128xf32>
    %cst_34 = arith.constant 5.000000e-01 : f32
    %61 = vector.broadcast %cst_34 : f32 to vector<8x128xf32>
    %62 = arith.mulf %61, %60 : vector<8x128xf32>
    %63 = math.tanh %62 : vector<8x128xf32>
    %cst_35 = arith.constant 1.000000e+00 : f32
    %64 = vector.broadcast %cst_35 : f32 to vector<8x128xf32>
    %65 = arith.addf %63, %64 : vector<8x128xf32>
    %cst_36 = arith.constant 5.000000e-01 : f32
    %66 = vector.broadcast %cst_36 : f32 to vector<8x128xf32>
    %67 = arith.mulf %66, %65 : vector<8x128xf32>
    %68 = vector.extract_strided_slice %59 {offsets = [0, 128], sizes = [8, 128], strides = [1, 1]} : vector<8x512xf32> to vector<8x128xf32>
    %cst_37 = arith.constant 5.000000e-01 : f32
    %69 = vector.broadcast %cst_37 : f32 to vector<8x128xf32>
    %70 = arith.mulf %69, %68 : vector<8x128xf32>
    %71 = math.tanh %70 : vector<8x128xf32>
    %cst_38 = arith.constant 1.000000e+00 : f32
    %72 = vector.broadcast %cst_38 : f32 to vector<8x128xf32>
    %73 = arith.addf %71, %72 : vector<8x128xf32>
    %cst_39 = arith.constant 5.000000e-01 : f32
    %74 = vector.broadcast %cst_39 : f32 to vector<8x128xf32>
    %75 = arith.mulf %74, %73 : vector<8x128xf32>
    %76 = vector.extract_strided_slice %59 {offsets = [0, 256], sizes = [8, 128], strides = [1, 1]} : vector<8x512xf32> to vector<8x128xf32>
    %77 = math.tanh %76 : vector<8x128xf32>
    %78 = vector.extract_strided_slice %59 {offsets = [0, 384], sizes = [8, 128], strides = [1, 1]} : vector<8x512xf32> to vector<8x128xf32>
    %cst_40 = arith.constant 5.000000e-01 : f32
    %79 = vector.broadcast %cst_40 : f32 to vector<8x128xf32>
    %80 = arith.mulf %79, %78 : vector<8x128xf32>
    %81 = math.tanh %80 : vector<8x128xf32>
    %cst_41 = arith.constant 1.000000e+00 : f32
    %82 = vector.broadcast %cst_41 : f32 to vector<8x128xf32>
    %83 = arith.addf %81, %82 : vector<8x128xf32>
    %cst_42 = arith.constant 5.000000e-01 : f32
    %84 = vector.broadcast %cst_42 : f32 to vector<8x128xf32>
    %85 = arith.mulf %84, %83 : vector<8x128xf32>
    %86 = arith.mulf %75, %48 : vector<8x128xf32>
    %87 = arith.mulf %67, %77 : vector<8x128xf32>
    %88 = arith.addf %86, %87 : vector<8x128xf32>
    %89 = math.tanh %88 : vector<8x128xf32>
    %90 = arith.mulf %85, %89 : vector<8x128xf32>
    %91 = arith.index_cast %c1_i32 : i32 to index
    %c0_43 = arith.constant 0 : index
    %c0_44 = arith.constant 0 : index
    %92 = vector.load %arg8[%91, %c0_43, %c0_44] : memref<8x8x128xf32, #tpu.memory_space<vmem>>, vector<1x8x128xf32>
    %93 = vector.shape_cast %92 : vector<1x8x128xf32> to vector<8x128xf32>
    %94 = vector.shape_cast %90 : vector<8x128xf32> to vector<1x8x128xf32>
    tpu.vector_store %arg8[%91, %c0_43, %c0_44], %94 {strides = array<i32>} : memref<8x8x128xf32, #tpu.memory_space<vmem>>, vector<1x8x128xf32>,
    %c2_i32 = arith.constant 2 : i32
    %95 = arith.index_cast %c2_i32 : i32 to index
    %c0_45 = arith.constant 0 : index
    %c0_46 = arith.constant 0 : index
    %96 = vector.load %arg10[%95, %c0_45, %c0_46] : memref<8x8x512xf32, #tpu.memory_space<vmem>>, vector<1x8x512xf32>
    %97 = vector.shape_cast %96 : vector<1x8x512xf32> to vector<8x512xf32>
    %cst_47 = arith.constant dense<0.000000e+00> : vector<8x512xf32>
    %98 = tpu.matmul %90, %12, %cst_47 {dimension_numbers = #tpu.dot_dimension_numbers<[1], [0], [0], [1], [0, 0, 1, 1], [], []>} : vector<8x128xf32>, vector<128x512xf32>, vector<8x512xf32> -> vector<8x512xf32>
    %99 = arith.addf %97, %98 : vector<8x512xf32>
    %100 = vector.extract_strided_slice %99 {offsets = [0, 0], sizes = [8, 128], strides = [1, 1]} : vector<8x512xf32> to vector<8x128xf32>
    %cst_48 = arith.constant 5.000000e-01 : f32
    %101 = vector.broadcast %cst_48 : f32 to vector<8x128xf32>
    %102 = arith.mulf %101, %100 : vector<8x128xf32>
    %103 = math.tanh %102 : vector<8x128xf32>
    %cst_49 = arith.constant 1.000000e+00 : f32
    %104 = vector.broadcast %cst_49 : f32 to vector<8x128xf32>
    %105 = arith.addf %103, %104 : vector<8x128xf32>
    %cst_50 = arith.constant 5.000000e-01 : f32
    %106 = vector.broadcast %cst_50 : f32 to vector<8x128xf32>
    %107 = arith.mulf %106, %105 : vector<8x128xf32>
    %108 = vector.extract_strided_slice %99 {offsets = [0, 128], sizes = [8, 128], strides = [1, 1]} : vector<8x512xf32> to vector<8x128xf32>
    %cst_51 = arith.constant 5.000000e-01 : f32
    %109 = vector.broadcast %cst_51 : f32 to vector<8x128xf32>
    %110 = arith.mulf %109, %108 : vector<8x128xf32>
    %111 = math.tanh %110 : vector<8x128xf32>
    %cst_52 = arith.constant 1.000000e+00 : f32
    %112 = vector.broadcast %cst_52 : f32 to vector<8x128xf32>
    %113 = arith.addf %111, %112 : vector<8x128xf32>
    %cst_53 = arith.constant 5.000000e-01 : f32
    %114 = vector.broadcast %cst_53 : f32 to vector<8x128xf32>
    %115 = arith.mulf %114, %113 : vector<8x128xf32>
    %116 = vector.extract_strided_slice %99 {offsets = [0, 256], sizes = [8, 128], strides = [1, 1]} : vector<8x512xf32> to vector<8x128xf32>
    %117 = math.tanh %116 : vector<8x128xf32>
    %118 = vector.extract_strided_slice %99 {offsets = [0, 384], sizes = [8, 128], strides = [1, 1]} : vector<8x512xf32> to vector<8x128xf32>
    %cst_54 = arith.constant 5.000000e-01 : f32
    %119 = vector.broadcast %cst_54 : f32 to vector<8x128xf32>
    %120 = arith.mulf %119, %118 : vector<8x128xf32>
    %121 = math.tanh %120 : vector<8x128xf32>
    %cst_55 = arith.constant 1.000000e+00 : f32
    %122 = vector.broadcast %cst_55 : f32 to vector<8x128xf32>
    %123 = arith.addf %121, %122 : vector<8x128xf32>
    %cst_56 = arith.constant 5.000000e-01 : f32
    %124 = vector.broadcast %cst_56 : f32 to vector<8x128xf32>
    %125 = arith.mulf %124, %123 : vector<8x128xf32>
    %126 = arith.mulf %115, %88 : vector<8x128xf32>
    %127 = arith.mulf %107, %117 : vector<8x128xf32>
    %128 = arith.addf %126, %127 : vector<8x128xf32>
    %129 = math.tanh %128 : vector<8x128xf32>
    %130 = arith.mulf %125, %129 : vector<8x128xf32>
    %131 = arith.index_cast %c2_i32 : i32 to index
    %c0_57 = arith.constant 0 : index
    %c0_58 = arith.constant 0 : index
    %132 = vector.load %arg8[%131, %c0_57, %c0_58] : memref<8x8x128xf32, #tpu.memory_space<vmem>>, vector<1x8x128xf32>
    %133 = vector.shape_cast %132 : vector<1x8x128xf32> to vector<8x128xf32>
    %134 = vector.shape_cast %130 : vector<8x128xf32> to vector<1x8x128xf32>
    tpu.vector_store %arg8[%131, %c0_57, %c0_58], %134 {strides = array<i32>} : memref<8x8x128xf32, #tpu.memory_space<vmem>>, vector<1x8x128xf32>,
    %c3_i32 = arith.constant 3 : i32
    %135 = arith.index_cast %c3_i32 : i32 to index
    %c0_59 = arith.constant 0 : index
    %c0_60 = arith.constant 0 : index
    %136 = vector.load %arg10[%135, %c0_59, %c0_60] : memref<8x8x512xf32, #tpu.memory_space<vmem>>, vector<1x8x512xf32>
    %137 = vector.shape_cast %136 : vector<1x8x512xf32> to vector<8x512xf32>
    %cst_61 = arith.constant dense<0.000000e+00> : vector<8x512xf32>
    %138 = tpu.matmul %130, %12, %cst_61 {dimension_numbers = #tpu.dot_dimension_numbers<[1], [0], [0], [1], [0, 0, 1, 1], [], []>} : vector<8x128xf32>, vector<128x512xf32>, vector<8x512xf32> -> vector<8x512xf32>
    %139 = arith.addf %137, %138 : vector<8x512xf32>
    %140 = vector.extract_strided_slice %139 {offsets = [0, 0], sizes = [8, 128], strides = [1, 1]} : vector<8x512xf32> to vector<8x128xf32>
    %cst_62 = arith.constant 5.000000e-01 : f32
    %141 = vector.broadcast %cst_62 : f32 to vector<8x128xf32>
    %142 = arith.mulf %141, %140 : vector<8x128xf32>
    %143 = math.tanh %142 : vector<8x128xf32>
    %cst_63 = arith.constant 1.000000e+00 : f32
    %144 = vector.broadcast %cst_63 : f32 to vector<8x128xf32>
    %145 = arith.addf %143, %144 : vector<8x128xf32>
    %cst_64 = arith.constant 5.000000e-01 : f32
    %146 = vector.broadcast %cst_64 : f32 to vector<8x128xf32>
    %147 = arith.mulf %146, %145 : vector<8x128xf32>
    %148 = vector.extract_strided_slice %139 {offsets = [0, 128], sizes = [8, 128], strides = [1, 1]} : vector<8x512xf32> to vector<8x128xf32>
    %cst_65 = arith.constant 5.000000e-01 : f32
    %149 = vector.broadcast %cst_65 : f32 to vector<8x128xf32>
    %150 = arith.mulf %149, %148 : vector<8x128xf32>
    %151 = math.tanh %150 : vector<8x128xf32>
    %cst_66 = arith.constant 1.000000e+00 : f32
    %152 = vector.broadcast %cst_66 : f32 to vector<8x128xf32>
    %153 = arith.addf %151, %152 : vector<8x128xf32>
    %cst_67 = arith.constant 5.000000e-01 : f32
    %154 = vector.broadcast %cst_67 : f32 to vector<8x128xf32>
    %155 = arith.mulf %154, %153 : vector<8x128xf32>
    %156 = vector.extract_strided_slice %139 {offsets = [0, 256], sizes = [8, 128], strides = [1, 1]} : vector<8x512xf32> to vector<8x128xf32>
    %157 = math.tanh %156 : vector<8x128xf32>
    %158 = vector.extract_strided_slice %139 {offsets = [0, 384], sizes = [8, 128], strides = [1, 1]} : vector<8x512xf32> to vector<8x128xf32>
    %cst_68 = arith.constant 5.000000e-01 : f32
    %159 = vector.broadcast %cst_68 : f32 to vector<8x128xf32>
    %160 = arith.mulf %159, %158 : vector<8x128xf32>
    %161 = math.tanh %160 : vector<8x128xf32>
    %cst_69 = arith.constant 1.000000e+00 : f32
    %162 = vector.broadcast %cst_69 : f32 to vector<8x128xf32>
    %163 = arith.addf %161, %162 : vector<8x128xf32>
    %cst_70 = arith.constant 5.000000e-01 : f32
    %164 = vector.broadcast %cst_70 : f32 to vector<8x128xf32>
    %165 = arith.mulf %164, %163 : vector<8x128xf32>
    %166 = arith.mulf %155, %128 : vector<8x128xf32>
    %167 = arith.mulf %147, %157 : vector<8x128xf32>
    %168 = arith.addf %166, %167 : vector<8x128xf32>
    %169 = math.tanh %168 : vector<8x128xf32>
    %170 = arith.mulf %165, %169 : vector<8x128xf32>
    %171 = arith.index_cast %c3_i32 : i32 to index
    %c0_71 = arith.constant 0 : index
    %c0_72 = arith.constant 0 : index
    %172 = vector.load %arg8[%171, %c0_71, %c0_72] : memref<8x8x128xf32, #tpu.memory_space<vmem>>, vector<1x8x128xf32>
    %173 = vector.shape_cast %172 : vector<1x8x128xf32> to vector<8x128xf32>
    %174 = vector.shape_cast %170 : vector<8x128xf32> to vector<1x8x128xf32>
    tpu.vector_store %arg8[%171, %c0_71, %c0_72], %174 {strides = array<i32>} : memref<8x8x128xf32, #tpu.memory_space<vmem>>, vector<1x8x128xf32>,
    %c4_i32 = arith.constant 4 : i32
    %175 = arith.index_cast %c4_i32 : i32 to index
    %c0_73 = arith.constant 0 : index
    %c0_74 = arith.constant 0 : index
    %176 = vector.load %arg10[%175, %c0_73, %c0_74] : memref<8x8x512xf32, #tpu.memory_space<vmem>>, vector<1x8x512xf32>
    %177 = vector.shape_cast %176 : vector<1x8x512xf32> to vector<8x512xf32>
    %cst_75 = arith.constant dense<0.000000e+00> : vector<8x512xf32>
    %178 = tpu.matmul %170, %12, %cst_75 {dimension_numbers = #tpu.dot_dimension_numbers<[1], [0], [0], [1], [0, 0, 1, 1], [], []>} : vector<8x128xf32>, vector<128x512xf32>, vector<8x512xf32> -> vector<8x512xf32>
    %179 = arith.addf %177, %178 : vector<8x512xf32>
    %180 = vector.extract_strided_slice %179 {offsets = [0, 0], sizes = [8, 128], strides = [1, 1]} : vector<8x512xf32> to vector<8x128xf32>
    %cst_76 = arith.constant 5.000000e-01 : f32
    %181 = vector.broadcast %cst_76 : f32 to vector<8x128xf32>
    %182 = arith.mulf %181, %180 : vector<8x128xf32>
    %183 = math.tanh %182 : vector<8x128xf32>
    %cst_77 = arith.constant 1.000000e+00 : f32
    %184 = vector.broadcast %cst_77 : f32 to vector<8x128xf32>
    %185 = arith.addf %183, %184 : vector<8x128xf32>
    %cst_78 = arith.constant 5.000000e-01 : f32
    %186 = vector.broadcast %cst_78 : f32 to vector<8x128xf32>
    %187 = arith.mulf %186, %185 : vector<8x128xf32>
    %188 = vector.extract_strided_slice %179 {offsets = [0, 128], sizes = [8, 128], strides = [1, 1]} : vector<8x512xf32> to vector<8x128xf32>
    %cst_79 = arith.constant 5.000000e-01 : f32
    %189 = vector.broadcast %cst_79 : f32 to vector<8x128xf32>
    %190 = arith.mulf %189, %188 : vector<8x128xf32>
    %191 = math.tanh %190 : vector<8x128xf32>
    %cst_80 = arith.constant 1.000000e+00 : f32
    %192 = vector.broadcast %cst_80 : f32 to vector<8x128xf32>
    %193 = arith.addf %191, %192 : vector<8x128xf32>
    %cst_81 = arith.constant 5.000000e-01 : f32
    %194 = vector.broadcast %cst_81 : f32 to vector<8x128xf32>
    %195 = arith.mulf %194, %193 : vector<8x128xf32>
    %196 = vector.extract_strided_slice %179 {offsets = [0, 256], sizes = [8, 128], strides = [1, 1]} : vector<8x512xf32> to vector<8x128xf32>
    %197 = math.tanh %196 : vector<8x128xf32>
    %198 = vector.extract_strided_slice %179 {offsets = [0, 384], sizes = [8, 128], strides = [1, 1]} : vector<8x512xf32> to vector<8x128xf32>
    %cst_82 = arith.constant 5.000000e-01 : f32
    %199 = vector.broadcast %cst_82 : f32 to vector<8x128xf32>
    %200 = arith.mulf %199, %198 : vector<8x128xf32>
    %201 = math.tanh %200 : vector<8x128xf32>
    %cst_83 = arith.constant 1.000000e+00 : f32
    %202 = vector.broadcast %cst_83 : f32 to vector<8x128xf32>
    %203 = arith.addf %201, %202 : vector<8x128xf32>
    %cst_84 = arith.constant 5.000000e-01 : f32
    %204 = vector.broadcast %cst_84 : f32 to vector<8x128xf32>
    %205 = arith.mulf %204, %203 : vector<8x128xf32>
    %206 = arith.mulf %195, %168 : vector<8x128xf32>
    %207 = arith.mulf %187, %197 : vector<8x128xf32>
    %208 = arith.addf %206, %207 : vector<8x128xf32>
    %209 = math.tanh %208 : vector<8x128xf32>
    %210 = arith.mulf %205, %209 : vector<8x128xf32>
    %211 = arith.index_cast %c4_i32 : i32 to index
    %c0_85 = arith.constant 0 : index
    %c0_86 = arith.constant 0 : index
    %212 = vector.load %arg8[%211, %c0_85, %c0_86] : memref<8x8x128xf32, #tpu.memory_space<vmem>>, vector<1x8x128xf32>
    %213 = vector.shape_cast %212 : vector<1x8x128xf32> to vector<8x128xf32>
    %214 = vector.shape_cast %210 : vector<8x128xf32> to vector<1x8x128xf32>
    tpu.vector_store %arg8[%211, %c0_85, %c0_86], %214 {strides = array<i32>} : memref<8x8x128xf32, #tpu.memory_space<vmem>>, vector<1x8x128xf32>,
    %c5_i32 = arith.constant 5 : i32
    %215 = arith.index_cast %c5_i32 : i32 to index
    %c0_87 = arith.constant 0 : index
    %c0_88 = arith.constant 0 : index
    %216 = vector.load %arg10[%215, %c0_87, %c0_88] : memref<8x8x512xf32, #tpu.memory_space<vmem>>, vector<1x8x512xf32>
    %217 = vector.shape_cast %216 : vector<1x8x512xf32> to vector<8x512xf32>
    %cst_89 = arith.constant dense<0.000000e+00> : vector<8x512xf32>
    %218 = tpu.matmul %210, %12, %cst_89 {dimension_numbers = #tpu.dot_dimension_numbers<[1], [0], [0], [1], [0, 0, 1, 1], [], []>} : vector<8x128xf32>, vector<128x512xf32>, vector<8x512xf32> -> vector<8x512xf32>
    %219 = arith.addf %217, %218 : vector<8x512xf32>
    %220 = vector.extract_strided_slice %219 {offsets = [0, 0], sizes = [8, 128], strides = [1, 1]} : vector<8x512xf32> to vector<8x128xf32>
    %cst_90 = arith.constant 5.000000e-01 : f32
    %221 = vector.broadcast %cst_90 : f32 to vector<8x128xf32>
    %222 = arith.mulf %221, %220 : vector<8x128xf32>
    %223 = math.tanh %222 : vector<8x128xf32>
    %cst_91 = arith.constant 1.000000e+00 : f32
    %224 = vector.broadcast %cst_91 : f32 to vector<8x128xf32>
    %225 = arith.addf %223, %224 : vector<8x128xf32>
    %cst_92 = arith.constant 5.000000e-01 : f32
    %226 = vector.broadcast %cst_92 : f32 to vector<8x128xf32>
    %227 = arith.mulf %226, %225 : vector<8x128xf32>
    %228 = vector.extract_strided_slice %219 {offsets = [0, 128], sizes = [8, 128], strides = [1, 1]} : vector<8x512xf32> to vector<8x128xf32>
    %cst_93 = arith.constant 5.000000e-01 : f32
    %229 = vector.broadcast %cst_93 : f32 to vector<8x128xf32>
    %230 = arith.mulf %229, %228 : vector<8x128xf32>
    %231 = math.tanh %230 : vector<8x128xf32>
    %cst_94 = arith.constant 1.000000e+00 : f32
    %232 = vector.broadcast %cst_94 : f32 to vector<8x128xf32>
    %233 = arith.addf %231, %232 : vector<8x128xf32>
    %cst_95 = arith.constant 5.000000e-01 : f32
    %234 = vector.broadcast %cst_95 : f32 to vector<8x128xf32>
    %235 = arith.mulf %234, %233 : vector<8x128xf32>
    %236 = vector.extract_strided_slice %219 {offsets = [0, 256], sizes = [8, 128], strides = [1, 1]} : vector<8x512xf32> to vector<8x128xf32>
    %237 = math.tanh %236 : vector<8x128xf32>
    %238 = vector.extract_strided_slice %219 {offsets = [0, 384], sizes = [8, 128], strides = [1, 1]} : vector<8x512xf32> to vector<8x128xf32>
    %cst_96 = arith.constant 5.000000e-01 : f32
    %239 = vector.broadcast %cst_96 : f32 to vector<8x128xf32>
    %240 = arith.mulf %239, %238 : vector<8x128xf32>
    %241 = math.tanh %240 : vector<8x128xf32>
    %cst_97 = arith.constant 1.000000e+00 : f32
    %242 = vector.broadcast %cst_97 : f32 to vector<8x128xf32>
    %243 = arith.addf %241, %242 : vector<8x128xf32>
    %cst_98 = arith.constant 5.000000e-01 : f32
    %244 = vector.broadcast %cst_98 : f32 to vector<8x128xf32>
    %245 = arith.mulf %244, %243 : vector<8x128xf32>
    %246 = arith.mulf %235, %208 : vector<8x128xf32>
    %247 = arith.mulf %227, %237 : vector<8x128xf32>
    %248 = arith.addf %246, %247 : vector<8x128xf32>
    %249 = math.tanh %248 : vector<8x128xf32>
    %250 = arith.mulf %245, %249 : vector<8x128xf32>
    %251 = arith.index_cast %c5_i32 : i32 to index
    %c0_99 = arith.constant 0 : index
    %c0_100 = arith.constant 0 : index
    %252 = vector.load %arg8[%251, %c0_99, %c0_100] : memref<8x8x128xf32, #tpu.memory_space<vmem>>, vector<1x8x128xf32>
    %253 = vector.shape_cast %252 : vector<1x8x128xf32> to vector<8x128xf32>
    %254 = vector.shape_cast %250 : vector<8x128xf32> to vector<1x8x128xf32>
    tpu.vector_store %arg8[%251, %c0_99, %c0_100], %254 {strides = array<i32>} : memref<8x8x128xf32, #tpu.memory_space<vmem>>, vector<1x8x128xf32>,
    %c6_i32 = arith.constant 6 : i32
    %255 = arith.index_cast %c6_i32 : i32 to index
    %c0_101 = arith.constant 0 : index
    %c0_102 = arith.constant 0 : index
    %256 = vector.load %arg10[%255, %c0_101, %c0_102] : memref<8x8x512xf32, #tpu.memory_space<vmem>>, vector<1x8x512xf32>
    %257 = vector.shape_cast %256 : vector<1x8x512xf32> to vector<8x512xf32>
    %cst_103 = arith.constant dense<0.000000e+00> : vector<8x512xf32>
    %258 = tpu.matmul %250, %12, %cst_103 {dimension_numbers = #tpu.dot_dimension_numbers<[1], [0], [0], [1], [0, 0, 1, 1], [], []>} : vector<8x128xf32>, vector<128x512xf32>, vector<8x512xf32> -> vector<8x512xf32>
    %259 = arith.addf %257, %258 : vector<8x512xf32>
    %260 = vector.extract_strided_slice %259 {offsets = [0, 0], sizes = [8, 128], strides = [1, 1]} : vector<8x512xf32> to vector<8x128xf32>
    %cst_104 = arith.constant 5.000000e-01 : f32
    %261 = vector.broadcast %cst_104 : f32 to vector<8x128xf32>
    %262 = arith.mulf %261, %260 : vector<8x128xf32>
    %263 = math.tanh %262 : vector<8x128xf32>
    %cst_105 = arith.constant 1.000000e+00 : f32
    %264 = vector.broadcast %cst_105 : f32 to vector<8x128xf32>
    %265 = arith.addf %263, %264 : vector<8x128xf32>
    %cst_106 = arith.constant 5.000000e-01 : f32
    %266 = vector.broadcast %cst_106 : f32 to vector<8x128xf32>
    %267 = arith.mulf %266, %265 : vector<8x128xf32>
    %268 = vector.extract_strided_slice %259 {offsets = [0, 128], sizes = [8, 128], strides = [1, 1]} : vector<8x512xf32> to vector<8x128xf32>
    %cst_107 = arith.constant 5.000000e-01 : f32
    %269 = vector.broadcast %cst_107 : f32 to vector<8x128xf32>
    %270 = arith.mulf %269, %268 : vector<8x128xf32>
    %271 = math.tanh %270 : vector<8x128xf32>
    %cst_108 = arith.constant 1.000000e+00 : f32
    %272 = vector.broadcast %cst_108 : f32 to vector<8x128xf32>
    %273 = arith.addf %271, %272 : vector<8x128xf32>
    %cst_109 = arith.constant 5.000000e-01 : f32
    %274 = vector.broadcast %cst_109 : f32 to vector<8x128xf32>
    %275 = arith.mulf %274, %273 : vector<8x128xf32>
    %276 = vector.extract_strided_slice %259 {offsets = [0, 256], sizes = [8, 128], strides = [1, 1]} : vector<8x512xf32> to vector<8x128xf32>
    %277 = math.tanh %276 : vector<8x128xf32>
    %278 = vector.extract_strided_slice %259 {offsets = [0, 384], sizes = [8, 128], strides = [1, 1]} : vector<8x512xf32> to vector<8x128xf32>
    %cst_110 = arith.constant 5.000000e-01 : f32
    %279 = vector.broadcast %cst_110 : f32 to vector<8x128xf32>
    %280 = arith.mulf %279, %278 : vector<8x128xf32>
    %281 = math.tanh %280 : vector<8x128xf32>
    %cst_111 = arith.constant 1.000000e+00 : f32
    %282 = vector.broadcast %cst_111 : f32 to vector<8x128xf32>
    %283 = arith.addf %281, %282 : vector<8x128xf32>
    %cst_112 = arith.constant 5.000000e-01 : f32
    %284 = vector.broadcast %cst_112 : f32 to vector<8x128xf32>
    %285 = arith.mulf %284, %283 : vector<8x128xf32>
    %286 = arith.mulf %275, %248 : vector<8x128xf32>
    %287 = arith.mulf %267, %277 : vector<8x128xf32>
    %288 = arith.addf %286, %287 : vector<8x128xf32>
    %289 = math.tanh %288 : vector<8x128xf32>
    %290 = arith.mulf %285, %289 : vector<8x128xf32>
    %291 = arith.index_cast %c6_i32 : i32 to index
    %c0_113 = arith.constant 0 : index
    %c0_114 = arith.constant 0 : index
    %292 = vector.load %arg8[%291, %c0_113, %c0_114] : memref<8x8x128xf32, #tpu.memory_space<vmem>>, vector<1x8x128xf32>
    %293 = vector.shape_cast %292 : vector<1x8x128xf32> to vector<8x128xf32>
    %294 = vector.shape_cast %290 : vector<8x128xf32> to vector<1x8x128xf32>
    tpu.vector_store %arg8[%291, %c0_113, %c0_114], %294 {strides = array<i32>} : memref<8x8x128xf32, #tpu.memory_space<vmem>>, vector<1x8x128xf32>,
    %c7_i32 = arith.constant 7 : i32
    %295 = arith.index_cast %c7_i32 : i32 to index
    %c0_115 = arith.constant 0 : index
    %c0_116 = arith.constant 0 : index
    %296 = vector.load %arg10[%295, %c0_115, %c0_116] : memref<8x8x512xf32, #tpu.memory_space<vmem>>, vector<1x8x512xf32>
    %297 = vector.shape_cast %296 : vector<1x8x512xf32> to vector<8x512xf32>
    %cst_117 = arith.constant dense<0.000000e+00> : vector<8x512xf32>
    %298 = tpu.matmul %290, %12, %cst_117 {dimension_numbers = #tpu.dot_dimension_numbers<[1], [0], [0], [1], [0, 0, 1, 1], [], []>} : vector<8x128xf32>, vector<128x512xf32>, vector<8x512xf32> -> vector<8x512xf32>
    %299 = arith.addf %297, %298 : vector<8x512xf32>
    %300 = vector.extract_strided_slice %299 {offsets = [0, 0], sizes = [8, 128], strides = [1, 1]} : vector<8x512xf32> to vector<8x128xf32>
    %cst_118 = arith.constant 5.000000e-01 : f32
    %301 = vector.broadcast %cst_118 : f32 to vector<8x128xf32>
    %302 = arith.mulf %301, %300 : vector<8x128xf32>
    %303 = math.tanh %302 : vector<8x128xf32>
    %cst_119 = arith.constant 1.000000e+00 : f32
    %304 = vector.broadcast %cst_119 : f32 to vector<8x128xf32>
    %305 = arith.addf %303, %304 : vector<8x128xf32>
    %cst_120 = arith.constant 5.000000e-01 : f32
    %306 = vector.broadcast %cst_120 : f32 to vector<8x128xf32>
    %307 = arith.mulf %306, %305 : vector<8x128xf32>
    %308 = vector.extract_strided_slice %299 {offsets = [0, 128], sizes = [8, 128], strides = [1, 1]} : vector<8x512xf32> to vector<8x128xf32>
    %cst_121 = arith.constant 5.000000e-01 : f32
    %309 = vector.broadcast %cst_121 : f32 to vector<8x128xf32>
    %310 = arith.mulf %309, %308 : vector<8x128xf32>
    %311 = math.tanh %310 : vector<8x128xf32>
    %cst_122 = arith.constant 1.000000e+00 : f32
    %312 = vector.broadcast %cst_122 : f32 to vector<8x128xf32>
    %313 = arith.addf %311, %312 : vector<8x128xf32>
    %cst_123 = arith.constant 5.000000e-01 : f32
    %314 = vector.broadcast %cst_123 : f32 to vector<8x128xf32>
    %315 = arith.mulf %314, %313 : vector<8x128xf32>
    %316 = vector.extract_strided_slice %299 {offsets = [0, 256], sizes = [8, 128], strides = [1, 1]} : vector<8x512xf32> to vector<8x128xf32>
    %317 = math.tanh %316 : vector<8x128xf32>
    %318 = vector.extract_strided_slice %299 {offsets = [0, 384], sizes = [8, 128], strides = [1, 1]} : vector<8x512xf32> to vector<8x128xf32>
    %cst_124 = arith.constant 5.000000e-01 : f32
    %319 = vector.broadcast %cst_124 : f32 to vector<8x128xf32>
    %320 = arith.mulf %319, %318 : vector<8x128xf32>
    %321 = math.tanh %320 : vector<8x128xf32>
    %cst_125 = arith.constant 1.000000e+00 : f32
    %322 = vector.broadcast %cst_125 : f32 to vector<8x128xf32>
    %323 = arith.addf %321, %322 : vector<8x128xf32>
    %cst_126 = arith.constant 5.000000e-01 : f32
    %324 = vector.broadcast %cst_126 : f32 to vector<8x128xf32>
    %325 = arith.mulf %324, %323 : vector<8x128xf32>
    %326 = arith.mulf %315, %288 : vector<8x128xf32>
    %327 = arith.mulf %307, %317 : vector<8x128xf32>
    %328 = arith.addf %326, %327 : vector<8x128xf32>
    %329 = math.tanh %328 : vector<8x128xf32>
    %330 = arith.mulf %325, %329 : vector<8x128xf32>
    %331 = arith.index_cast %c7_i32 : i32 to index
    %c0_127 = arith.constant 0 : index
    %c0_128 = arith.constant 0 : index
    %332 = vector.load %arg8[%331, %c0_127, %c0_128] : memref<8x8x128xf32, #tpu.memory_space<vmem>>, vector<1x8x128xf32>
    %333 = vector.shape_cast %332 : vector<1x8x128xf32> to vector<8x128xf32>
    %334 = vector.shape_cast %330 : vector<8x128xf32> to vector<1x8x128xf32>
    tpu.vector_store %arg8[%331, %c0_127, %c0_128], %334 {strides = array<i32>} : memref<8x8x128xf32, #tpu.memory_space<vmem>>, vector<1x8x128xf32>,
    %c8_i32 = arith.constant 8 : i32
    %c0_129 = arith.constant 0 : index
    %c0_130 = arith.constant 0 : index
    %335 = vector.load %arg11[%c0_129, %c0_130] : memref<8x128xf32, #tpu.memory_space<vmem>>, vector<8x128xf32>
    tpu.vector_store %arg11[%c0_129, %c0_130], %330 {strides = array<i32>} : memref<8x128xf32, #tpu.memory_space<vmem>>, vector<8x128xf32>,
    %c0_131 = arith.constant 0 : index
    %c0_132 = arith.constant 0 : index
    %336 = vector.load %arg12[%c0_131, %c0_132] : memref<8x128xf32, #tpu.memory_space<vmem>>, vector<8x128xf32>
    tpu.vector_store %arg12[%c0_131, %c0_132], %328 {strides = array<i32>} : memref<8x128xf32, #tpu.memory_space<vmem>>, vector<8x128xf32>,
    %c0_i32_133 = arith.constant 0 : i32
    %337 = arith.cmpi eq, %arg1, %c0_i32_133 : i32
    %338 = arith.extui %337 : i1 to i32
    %c0_i32_134 = arith.constant 0 : i32
    %339 = arith.cmpi ne, %338, %c0_i32_134 : i32
    scf.if %339 {
      %c0_135 = arith.constant 0 : index
      %c0_136 = arith.constant 0 : index
      %340 = vector.load %arg9[%c0_135, %c0_136] : memref<8x128xf32, #tpu.memory_space<vmem>>, vector<8x128xf32>
      tpu.vector_store %arg9[%c0_135, %c0_136], %328 {strides = array<i32>} : memref<8x128xf32, #tpu.memory_space<vmem>>, vector<8x128xf32>,
    } else {
    }
    return
  }
  func.func @transform_0(%arg0: i32, %arg1: i32) -> (i32, i32, i32) {
    %c0_i32 = arith.constant 0 : i32
    %c0_i32_0 = arith.constant 0 : i32
    return %arg1, %arg0, %c0_i32 : i32, i32, i32
  }
  func.func @transform_1(%arg0: i32, %arg1: i32) -> (i32, i32) {
    %c0_i32 = arith.constant 0 : i32
    %c0_i32_0 = arith.constant 0 : i32
    return %arg0, %c0_i32 : i32, i32
  }
  func.func @transform_2(%arg0: i32, %arg1: i32) -> (i32, i32) {
    %c0_i32 = arith.constant 0 : i32
    %c0_i32_0 = arith.constant 0 : i32
    return %arg0, %c0_i32 : i32, i32
  }
  func.func @transform_3(%arg0: i32, %arg1: i32) -> (i32, i32) {
    %c0_i32 = arith.constant 0 : i32
    %c0_i32_0 = arith.constant 0 : i32
    %c0_i32_1 = arith.constant 0 : i32
    return %c0_i32, %c0_i32_0 : i32, i32
  }
  func.func @transform_4(%arg0: i32, %arg1: i32) -> (i32, i32) {
    %c0_i32 = arith.constant 0 : i32
    %c0_i32_0 = arith.constant 0 : i32
    %c0_i32_1 = arith.constant 0 : i32
    return %c0_i32, %c0_i32_0 : i32, i32
  }
  func.func @transform_5(%arg0: i32, %arg1: i32) -> (i32, i32) {
    %c0_i32 = arith.constant 0 : i32
    %c0_i32_0 = arith.constant 0 : i32
    %c0_i32_1 = arith.constant 0 : i32
    return %c0_i32, %c0_i32_0 : i32, i32
  }
  func.func @transform_6(%arg0: i32, %arg1: i32) -> (i32, i32, i32) {
    %c0_i32 = arith.constant 0 : i32
    %c0_i32_0 = arith.constant 0 : i32
    return %arg1, %arg0, %c0_i32 : i32, i32, i32
  }
  func.func @transform_7(%arg0: i32, %arg1: i32) -> (i32, i32) {
    %c0_i32 = arith.constant 0 : i32
    %c0_i32_0 = arith.constant 0 : i32
    return %arg0, %c0_i32 : i32, i32
  }
}

</mosaic_0001>

<llo_original>
// kernel: tpu_custom_call.1
$region0: #{tpu_custom_call.1}
  #allocation0 [shape = 'u32[]', space=smem, size = 0x4, offset = 0x4, fixed_abs, tag = 'smem constant byte address 0x4 - core index']
  #allocation1 [shape = 'u32[144,128]{1,0:T(1,128)}', space=vmem, size = 0x12000, scoped, tag = 'internal scratch']
  #allocation2 [shape = 'f32[8,8,512]{2,1,0:T(8,128)}', space=vmem, size = 0x20000, scoped, tag = 'scratch operand']
  #allocation3 [shape = 'f32[8,128]{1,0:T(8,128)}', space=vmem, size = 0x1000, scoped, tag = 'scratch operand']
  #allocation4 [shape = 'f32[8,128]{1,0:T(8,128)}', space=vmem, size = 0x1000, scoped, tag = 'scratch operand']
  %s0 = inlined_call_operand.hbm [shape: f32[8,8,128], index: 0, kind: input, shape index: {}]
  %s1 = inlined_call_operand.hbm [shape: f32[8,128], index: 1, kind: input, shape index: {}]
  %s2 = inlined_call_operand.hbm [shape: f32[8,128], index: 2, kind: input, shape index: {}]
  %s3 = inlined_call_operand.hbm [shape: f32[128,512], index: 3, kind: input, shape index: {}]
  %s4 = inlined_call_operand.hbm [shape: f32[128,512], index: 4, kind: input, shape index: {}]
  %s5 = inlined_call_operand.vmem [shape: f32[1,512], index: 5, kind: input, shape index: {}]
  %s6 = inlined_call_operand.hbm [shape: f32[8,8,128], index: 6, kind: output, shape index: {0}]
  %s7 = inlined_call_operand.hbm [shape: f32[8,128], index: 7, kind: output, shape index: {1}]
  %8 = xla_tuple %s6, %s7
  %s9 = sld [smem:[#allocation0]]
  $region70: #{tpu_custom_call.1} parent=0
    _
  %s11 = ssub.s32 1, %s9
  %s12 = scalar_select 0, %s11, %s9
  $region1: #{tpu_custom_call.1} parent=0
    #allocation5 [shape = 'u8[32768]{0}', space=vmem, size = 0x8000, scoped, tag = 'input window, operand 0, single buffered']
    #allocation6 [shape = 's32[1]{0}', space=sflag, size = 0x4, scoped, tag = 'scoped memory for tpu_custom_call.1']
    #allocation7 [shape = 's32[1]{0}', space=sflag, size = 0x4, scoped, tag = 'scoped memory for tpu_custom_call.1']
    #allocation8 [shape = 'u8[4096]{0}', space=vmem, size = 0x1000, scoped, tag = 'input window, operand 1, single buffered']
    #allocation9 [shape = 's32[1]{0}', space=sflag, size = 0x4, scoped, tag = 'scoped memory for tpu_custom_call.1']
    #allocation10 [shape = 'u8[4096]{0}', space=vmem, size = 0x1000, scoped, tag = 'input window, operand 2, single buffered']
    #allocation11 [shape = 'u8[262144]{0}', space=vmem, size = 0x40000, scoped, tag = 'input window, operand 3, single buffered']
    #allocation12 [shape = 's32[1]{0}', space=sflag, size = 0x4, scoped, tag = 'scoped memory for tpu_custom_call.1']
    #allocation13 [shape = 'u8[262144]{0}', space=vmem, size = 0x40000, scoped, tag = 'input window, operand 4, single buffered']
    #allocation14 [shape = 'u8[32768]{0}', space=vmem, size = 0x8000, scoped, tag = 'output window, operand 0, single buffered']
    #allocation15 [shape = 'u8[4096]{0}', space=vmem, size = 0x1000, scoped, tag = 'output window, operand 1, single buffered']
    #allocation16 [shape = 's32[1]{0}', space=sflag, size = 0x4, scoped, tag = 'scoped memory for tpu_custom_call.1']
    %13 = vsyncpa [#allocation6], 0
    %14 = vsyncpa [#allocation9], 0
    %15 = vsyncpa [#allocation12], 0
    %16 = vsyncpa [#allocation7], 0
    %17 = vsyncpa [#allocation16], 0
    // Predicated region
    $region2: #{tpu_custom_call.1} parent=1 // pred_check
      _
    $region3: #{tpu_custom_call.1} parent=1 // pred_check_branch
      %19 = sbr.rel (0) target = $region5
    $region4: #{tpu_custom_call.1} parent=1 // pred_region
      %s21 = ssub.s32 1024, 1024
      %22 = vsyncadd [#allocation6], %s21
      %s23 = sshll.u32 [#allocation5], 4
      %s24 = int_to_ptr.vmem [resolvable:$true] %s23
      %29 = dma.hbm_to_vmem [thread:$0]  %s0, 1024, %s24, [#allocation6], 128, 128, 8
    $region5: #{tpu_custom_call.1} parent=1 // pred_fallthru
      _
    // Predicated region
    $region6: #{tpu_custom_call.1} parent=1 // pred_check
      _
    $region7: #{tpu_custom_call.1} parent=1 // pred_check_branch
      %31 = sbr.rel (0) target = $region9
    $region8: #{tpu_custom_call.1} parent=1 // pred_region
      %s33 = ssub.s32 128, 128
      %34 = vsyncadd [#allocation9], %s33
      %s36 = sshll.u32 [#allocation8], 4
      %s37 = int_to_ptr.vmem [resolvable:$true] %s36
      %39 = dma.hbm_to_vmem [thread:$0]  %s1, 128, %s37, [#allocation9]
    $region9: #{tpu_custom_call.1} parent=1 // pred_fallthru
      _
    // Predicated region
    $region10: #{tpu_custom_call.1} parent=1 // pred_check
      _
    $region11: #{tpu_custom_call.1} parent=1 // pred_check_branch
      %41 = sbr.rel (0) target = $region13
    $region12: #{tpu_custom_call.1} parent=1 // pred_region
      %s43 = ssub.s32 128, 128
      %44 = vsyncadd [#allocation9], %s43
      %s46 = sshll.u32 [#allocation10], 4
      %s47 = int_to_ptr.vmem [resolvable:$true] %s46
      %49 = dma.hbm_to_vmem [thread:$0]  %s2, 128, %s47, [#allocation9]
    $region13: #{tpu_custom_call.1} parent=1 // pred_fallthru
      _
    // Predicated region
    $region14: #{tpu_custom_call.1} parent=1 // pred_check
      _
    $region15: #{tpu_custom_call.1} parent=1 // pred_check_branch
      %51 = sbr.rel (0) target = $region17
    $region16: #{tpu_custom_call.1} parent=1 // pred_region
      %s53 = ssub.s32 8192, 8192
      %54 = vsyncadd [#allocation12], %s53
      %s55 = sshll.u32 [#allocation11], 4
      %s56 = int_to_ptr.vmem [resolvable:$true] %s55
      %61 = dma.hbm_to_vmem [thread:$0]  %s3, 8192, %s56, [#allocation12], 512, 512, 32
    $region17: #{tpu_custom_call.1} parent=1 // pred_fallthru
      _
    // Predicated region
    $region18: #{tpu_custom_call.1} parent=1 // pred_check
      _
    $region19: #{tpu_custom_call.1} parent=1 // pred_check_branch
      %63 = sbr.rel (0) target = $region21
    $region20: #{tpu_custom_call.1} parent=1 // pred_region
      %s65 = ssub.s32 8192, 8192
      %66 = vsyncadd [#allocation12], %s65
      %s67 = sshll.u32 [#allocation13], 4
      %s68 = int_to_ptr.vmem [resolvable:$true] %s67
      %73 = dma.hbm_to_vmem [thread:$0]  %s4, 8192, %s68, [#allocation12], 512, 512, 32
    $region21: #{tpu_custom_call.1} parent=1 // pred_fallthru
      _
    // Predicated region
    $region22: #{tpu_custom_call.1} parent=1 // pred_check
      _
    $region23: #{tpu_custom_call.1} parent=1 // pred_check_branch
      %75 = sbr.rel (0) target = $region25
    $region24: #{tpu_custom_call.1} parent=1 // pred_region
      _
    $region25: #{tpu_custom_call.1} parent=1 // pred_fallthru
      _
    // Predicated region
    $region26: #{tpu_custom_call.1} parent=1 // pred_check
      _
    $region27: #{tpu_custom_call.1} parent=1 // pred_check_branch
      %77 = sbr.rel (0) target = $region29
    $region28: #{tpu_custom_call.1} parent=1 // pred_region
      %78 = dma.done [#allocation6], 1024
    $region29: #{tpu_custom_call.1} parent=1 // pred_fallthru
      _
    // Predicated region
    $region30: #{tpu_custom_call.1} parent=1 // pred_check
      _
    $region31: #{tpu_custom_call.1} parent=1 // pred_check_branch
      %80 = sbr.rel (0) target = $region33
    $region32: #{tpu_custom_call.1} parent=1 // pred_region
      %81 = dma.done [#allocation9], 128
    $region33: #{tpu_custom_call.1} parent=1 // pred_fallthru
      _
    // Predicated region
    $region34: #{tpu_custom_call.1} parent=1 // pred_check
      _
    $region35: #{tpu_custom_call.1} parent=1 // pred_check_branch
      %83 = sbr.rel (0) target = $region37
    $region36: #{tpu_custom_call.1} parent=1 // pred_region
      %84 = dma.done [#allocation9], 128
    $region37: #{tpu_custom_call.1} parent=1 // pred_fallthru
      _
    // Predicated region
    $region38: #{tpu_custom_call.1} parent=1 // pred_check
      _
    $region39: #{tpu_custom_call.1} parent=1 // pred_check_branch
      %86 = sbr.rel (0) target = $region41
    $region40: #{tpu_custom_call.1} parent=1 // pred_region
      %87 = dma.done [#allocation12], 8192
    $region41: #{tpu_custom_call.1} parent=1 // pred_fallthru
      _
    // Predicated region
    $region42: #{tpu_custom_call.1} parent=1 // pred_check
      _
    $region43: #{tpu_custom_call.1} parent=1 // pred_check_branch
      %89 = sbr.rel (0) target = $region45
    $region44: #{tpu_custom_call.1} parent=1 // pred_region
      %90 = dma.done [#allocation12], 8192
    $region45: #{tpu_custom_call.1} parent=1 // pred_fallthru
      _
    %p91 = scmp.eq.s32.totalorder 0, 0
    // Predicated region
    $region46: #{tpu_custom_call.1} parent=1 // pred_check
      %p92 = pneg %p91
    $region47: #{tpu_custom_call.1} parent=1 // pred_check_branch
      %94 = sbr.rel (%p92) target = $region49
    $region48: #{tpu_custom_call.1} parent=1 // pred_region
      %v95 = vld [vmem:[#allocation8] sm:$0xff]
      %96 = vst [vmem:[#allocation3] sm:$0xff] %v95
      %v97 = vld [vmem:[#allocation10] sm:$0xff]
      %98 = vst [vmem:[#allocation4] sm:$0xff] %v97
    $region49: #{tpu_custom_call.1} parent=1 // pred_fallthru
      _
    %v99 = vld [vmem:[#allocation5] sm:$0xff]
    %v100 = vld [vmem:[#allocation5 + $0x8] sm:$0xff]
    %v101 = vld [vmem:[#allocation5 + $0x10] sm:$0xff]
    %v102 = vld [vmem:[#allocation5 + $0x18] sm:$0xff]
    %v103 = vld [vmem:[#allocation5 + $0x20] sm:$0xff]
    %v104 = vld [vmem:[#allocation5 + $0x28] sm:$0xff]
    %v105 = vld [vmem:[#allocation5 + $0x30] sm:$0xff]
    %v106 = vld [vmem:[#allocation5 + $0x38] sm:$0xff]
    %v107 = vld [vmem:[#allocation11] sm:$0xff]
    %v108 = vld [vmem:[#allocation11 + $0x8] sm:$0xff]
    %v109 = vld [vmem:[#allocation11 + $0x10] sm:$0xff]
    %v110 = vld [vmem:[#allocation11 + $0x18] sm:$0xff]
    %v111 = vld [vmem:[#allocation11 + $0x20] sm:$0xff]
    %v112 = vld [vmem:[#allocation11 + $0x28] sm:$0xff]
    %v113 = vld [vmem:[#allocation11 + $0x30] sm:$0xff]
    %v114 = vld [vmem:[#allocation11 + $0x38] sm:$0xff]
    %v115 = vld [vmem:[#allocation11 + $0x40] sm:$0xff]
    %v116 = vld [vmem:[#allocation11 + $0x48] sm:$0xff]
    %v117 = vld [vmem:[#allocation11 + $0x50] sm:$0xff]
    %v118 = vld [vmem:[#allocation11 + $0x58] sm:$0xff]
    %v119 = vld [vmem:[#allocation11 + $0x60] sm:$0xff]
    %v120 = vld [vmem:[#allocation11 + $0x68] sm:$0xff]
    %v121 = vld [vmem:[#allocation11 + $0x70] sm:$0xff]
    %v122 = vld [vmem:[#allocation11 + $0x78] sm:$0xff]
    %v123 = vld [vmem:[#allocation11 + $0x80] sm:$0xff]
    %v124 = vld [vmem:[#allocation11 + $0x88] sm:$0xff]
    %v125 = vld [vmem:[#allocation11 + $0x90] sm:$0xff]
    %v126 = vld [vmem:[#allocation11 + $0x98] sm:$0xff]
    %v127 = vld [vmem:[#allocation11 + $0xa0] sm:$0xff]
    %v128 = vld [vmem:[#allocation11 + $0xa8] sm:$0xff]
    %v129 = vld [vmem:[#allocation11 + $0xb0] sm:$0xff]
    %v130 = vld [vmem:[#allocation11 + $0xb8] sm:$0xff]
    %v131 = vld [vmem:[#allocation11 + $0xc0] sm:$0xff]
    %v132 = vld [vmem:[#allocation11 + $0xc8] sm:$0xff]
    %v133 = vld [vmem:[#allocation11 + $0xd0] sm:$0xff]
    %v134 = vld [vmem:[#allocation11 + $0xd8] sm:$0xff]
    %v135 = vld [vmem:[#allocation11 + $0xe0] sm:$0xff]
    %v136 = vld [vmem:[#allocation11 + $0xe8] sm:$0xff]
    %v137 = vld [vmem:[#allocation11 + $0xf0] sm:$0xff]
    %v138 = vld [vmem:[#allocation11 + $0xf8] sm:$0xff]
    %v139 = vld [vmem:[#allocation11 + $0x100] sm:$0xff]
    %v140 = vld [vmem:[#allocation11 + $0x108] sm:$0xff]
    %v141 = vld [vmem:[#allocation11 + $0x110] sm:$0xff]
    %v142 = vld [vmem:[#allocation11 + $0x118] sm:$0xff]
    %v143 = vld [vmem:[#allocation11 + $0x120] sm:$0xff]
    %v144 = vld [vmem:[#allocation11 + $0x128] sm:$0xff]
    %v145 = vld [vmem:[#allocation11 + $0x130] sm:$0xff]
    %v146 = vld [vmem:[#allocation11 + $0x138] sm:$0xff]
    %v147 = vld [vmem:[#allocation11 + $0x140] sm:$0xff]
    %v148 = vld [vmem:[#allocation11 + $0x148] sm:$0xff]
    %v149 = vld [vmem:[#allocation11 + $0x150] sm:$0xff]
    %v150 = vld [vmem:[#allocation11 + $0x158] sm:$0xff]
    %v151 = vld [vmem:[#allocation11 + $0x160] sm:$0xff]
    %v152 = vld [vmem:[#allocation11 + $0x168] sm:$0xff]
    %v153 = vld [vmem:[#allocation11 + $0x170] sm:$0xff]
    %v154 = vld [vmem:[#allocation11 + $0x178] sm:$0xff]
    %v155 = vld [vmem:[#allocation11 + $0x180] sm:$0xff]
    %v156 = vld [vmem:[#allocation11 + $0x188] sm:$0xff]
    %v157 = vld [vmem:[#allocation11 + $0x190] sm:$0xff]
    %v158 = vld [vmem:[#allocation11 + $0x198] sm:$0xff]
    %v159 = vld [vmem:[#allocation11 + $0x1a0] sm:$0xff]
    %v160 = vld [vmem:[#allocation11 + $0x1a8] sm:$0xff]
    %v161 = vld [vmem:[#allocation11 + $0x1b0] sm:$0xff]
    %v162 = vld [vmem:[#allocation11 + $0x1b8] sm:$0xff]
    %v163 = vld [vmem:[#allocation11 + $0x1c0] sm:$0xff]
    %v164 = vld [vmem:[#allocation11 + $0x1c8] sm:$0xff]
    %v165 = vld [vmem:[#allocation11 + $0x1d0] sm:$0xff]
    %v166 = vld [vmem:[#allocation11 + $0x1d8] sm:$0xff]
    %v167 = vld [vmem:[#allocation11 + $0x1e0] sm:$0xff]
    %v168 = vld [vmem:[#allocation11 + $0x1e8] sm:$0xff]
    %v169 = vld [vmem:[#allocation11 + $0x1f0] sm:$0xff]
    %v170 = vld [vmem:[#allocation11 + $0x1f8] sm:$0xff]
    %v171 = vld [vmem:[%s5] sm:$0xf]
    %v173 = vlaneseq
    %v174 = vshrl.u32 %v173, 7
    %v175 = vsub.s32 0, %v174
    %v176 = vrot.slane %v171, %v175
    %v177 = vlaneseq
    %v178 = vshrl.u32 %v177, 7
    %v179 = vsub.s32 1, %v178
    %v180 = vrot.slane %v171, %v179
    %v181 = vlaneseq
    %v182 = vshrl.u32 %v181, 7
    %v183 = vsub.s32 2, %v182
    %v184 = vrot.slane %v171, %v183
    %v185 = vlaneseq
    %v186 = vshrl.u32 %v185, 7
    %v187 = vsub.s32 3, %v186
    %v188 = vrot.slane %v171, %v187
    %193 = vmatprep.subr.mxu0 %v108
    %194 = vmatpush1.msra.mxu0 %v107
    %195 = vmatprep.subr.mxu0 %v112
    %196 = vmatpush1.msra.mxu0 %v111
    %197 = vmatprep.subr.mxu0 %v116
    %198 = vmatpush1.msra.mxu0 %v115
    %199 = vmatprep.subr.mxu0 %v120
    %200 = vmatpush1.msra.mxu0 %v119
    %201 = vmatprep.subr.mxu0 %v124
    %202 = vmatpush1.msra.mxu0 %v123
    %203 = vmatprep.subr.mxu0 %v128
    %204 = vmatpush1.msra.mxu0 %v127
    %205 = vmatprep.subr.mxu0 %v132
    %206 = vmatpush1.msra.mxu0 %v131
    %207 = vmatprep.subr.mxu0 %v136
    %208 = vmatpush1.msra.mxu0 %v135
    %209 = vmatprep.subr.mxu0 %v140
    %210 = vmatpush1.msra.mxu0 %v139
    %211 = vmatprep.subr.mxu0 %v144
    %212 = vmatpush1.msra.mxu0 %v143
    %213 = vmatprep.subr.mxu0 %v148
    %214 = vmatpush1.msra.mxu0 %v147
    %215 = vmatprep.subr.mxu0 %v152
    %216 = vmatpush1.msra.mxu0 %v151
    %217 = vmatprep.subr.mxu0 %v156
    %218 = vmatpush1.msra.mxu0 %v155
    %219 = vmatprep.subr.mxu0 %v160
    %220 = vmatpush1.msra.mxu0 %v159
    %221 = vmatprep.subr.mxu0 %v164
    %222 = vmatpush1.msra.mxu0 %v163
    %223 = vmatprep.subr.mxu0 %v168
    %224 = vmatpush1.msra.mxu0 %v167
    %225 = vmatprep.subr.mxu0 0.0
    %226 = vmatpush1.msra.mxu0 0.0
    %227 = vmatprep.subr.mxu0 0.0
    %228 = vmatpush1.msra.mxu0 0.0
    %229 = vmatprep.subr.mxu0 0.0
    %230 = vmatpush1.msra.mxu0 0.0
    %231 = vmatprep.subr.mxu0 0.0
    %232 = vmatpush1.msra.mxu0 0.0
    %233 = vmatprep.subr.mxu0 0.0
    %234 = vmatpush1.msra.mxu0 0.0
    %235 = vmatprep.subr.mxu0 0.0
    %236 = vmatpush1.msra.mxu0 0.0
    %237 = vmatprep.subr.mxu0 0.0
    %238 = vmatpush1.msra.mxu0 0.0
    %239 = vmatprep.subr.mxu0 0.0
    %240 = vmatpush1.msra.mxu0 0.0
    %241 = vmatprep.subr.mxu0 0.0
    %242 = vmatpush1.msra.mxu0 0.0
    %243 = vmatprep.subr.mxu0 0.0
    %244 = vmatpush1.msra.mxu0 0.0
    %245 = vmatprep.subr.mxu0 0.0
    %246 = vmatpush1.msra.mxu0 0.0
    %247 = vmatprep.subr.mxu0 0.0
    %248 = vmatpush1.msra.mxu0 0.0
    %249 = vmatprep.subr.mxu0 0.0
    %250 = vmatpush1.msra.mxu0 0.0
    %251 = vmatprep.subr.mxu0 0.0
    %252 = vmatpush1.msra.mxu0 0.0
    %253 = vmatprep.subr.mxu0 0.0
    %254 = vmatpush1.msra.mxu0 0.0
    %255 = vmatprep.subr.mxu0 0.0
    %256 = vmatpush1.msra.mxu0 0.0
    %257 = vmatprep.mubr.f32.mxu0 0.0
    %258 = vmatmul.mubr.f32.gmra.mrb[0].mxu0 %v99
    %v259 = vpop.f32.mrb[0].mxu0
    %v260 = vadd.f32 %v176, %v259
    %v261 = vpop.f32.mrb[0].mxu0
    %v262 = vadd.f32 %v180, %v261
    %263 = vmatprep.mubr.f32.mxu0 0.0
    %264 = vmatmul.mubr.f32.gmra.mrb[0].mxu0 %v100
    %v265 = vpop.f32.mrb[0].mxu0
    %v266 = vadd.f32 %v176, %v265
    %v267 = vpop.f32.mrb[0].mxu0
    %v268 = vadd.f32 %v180, %v267
    %269 = vmatprep.mubr.f32.mxu0 0.0
    %270 = vmatmul.mubr.f32.gmra.mrb[0].mxu0 %v101
    %v271 = vpop.f32.mrb[0].mxu0
    %v272 = vadd.f32 %v176, %v271
    %v273 = vpop.f32.mrb[0].mxu0
    %v274 = vadd.f32 %v180, %v273
    %275 = vmatprep.mubr.f32.mxu0 0.0
    %276 = vmatmul.mubr.f32.gmra.mrb[0].mxu0 %v102
    %v277 = vpop.f32.mrb[0].mxu0
    %v278 = vadd.f32 %v176, %v277
    %v279 = vpop.f32.mrb[0].mxu0
    %v280 = vadd.f32 %v180, %v279
    %281 = vmatprep.mubr.f32.mxu0 0.0
    %282 = vmatmul.mubr.f32.gmra.mrb[0].mxu0 %v103
    %v283 = vpop.f32.mrb[0].mxu0
    %v284 = vadd.f32 %v176, %v283
    %v285 = vpop.f32.mrb[0].mxu0
    %v286 = vadd.f32 %v180, %v285
    %287 = vmatprep.mubr.f32.mxu0 0.0
    %288 = vmatmul.mubr.f32.gmra.mrb[0].mxu0 %v104
    %v289 = vpop.f32.mrb[0].mxu0
    %v290 = vadd.f32 %v176, %v289
    %v291 = vpop.f32.mrb[0].mxu0
    %v292 = vadd.f32 %v180, %v291
    %293 = vmatprep.mubr.f32.mxu0 0.0
    %294 = vmatmul.mubr.f32.gmra.mrb[0].mxu0 %v105
    %v295 = vpop.f32.mrb[0].mxu0
    %v296 = vadd.f32 %v176, %v295
    %v297 = vpop.f32.mrb[0].mxu0
    %v298 = vadd.f32 %v180, %v297
    %299 = vmatprep.mubr.f32.mxu0 0.0
    %300 = vmatmul.mubr.f32.gmra.mrb[0].mxu0 %v106
    %v301 = vpop.f32.mrb[0].mxu0
    %v302 = vadd.f32 %v176, %v301
    %v303 = vpop.f32.mrb[0].mxu0
    %v304 = vadd.f32 %v180, %v303
    %305 = vdwg.mxu0
    %306 = vmatprep.subr.mxu0 %v110
    %307 = vmatpush1.msra.mxu0 %v109
    %308 = vmatprep.subr.mxu0 %v114
    %309 = vmatpush1.msra.mxu0 %v113
    %310 = vmatprep.subr.mxu0 %v118
    %311 = vmatpush1.msra.mxu0 %v117
    %312 = vmatprep.subr.mxu0 %v122
    %313 = vmatpush1.msra.mxu0 %v121
    %314 = vmatprep.subr.mxu0 %v126
    %315 = vmatpush1.msra.mxu0 %v125
    %316 = vmatprep.subr.mxu0 %v130
    %317 = vmatpush1.msra.mxu0 %v129
    %318 = vmatprep.subr.mxu0 %v134
    %319 = vmatpush1.msra.mxu0 %v133
    %320 = vmatprep.subr.mxu0 %v138
    %321 = vmatpush1.msra.mxu0 %v137
    %322 = vmatprep.subr.mxu0 %v142
    %323 = vmatpush1.msra.mxu0 %v141
    %324 = vmatprep.subr.mxu0 %v146
    %325 = vmatpush1.msra.mxu0 %v145
    %326 = vmatprep.subr.mxu0 %v150
    %327 = vmatpush1.msra.mxu0 %v149
    %328 = vmatprep.subr.mxu0 %v154
    %329 = vmatpush1.msra.mxu0 %v153
    %330 = vmatprep.subr.mxu0 %v158
    %331 = vmatpush1.msra.mxu0 %v157
    %332 = vmatprep.subr.mxu0 %v162
    %333 = vmatpush1.msra.mxu0 %v161
    %334 = vmatprep.subr.mxu0 %v166
    %335 = vmatpush1.msra.mxu0 %v165
    %336 = vmatprep.subr.mxu0 %v170
    %337 = vmatpush1.msra.mxu0 %v169
    %338 = vmatprep.subr.mxu0 0.0
    %339 = vmatpush1.msra.mxu0 0.0
    %340 = vmatprep.subr.mxu0 0.0
    %341 = vmatpush1.msra.mxu0 0.0
    %342 = vmatprep.subr.mxu0 0.0
    %343 = vmatpush1.msra.mxu0 0.0
    %344 = vmatprep.subr.mxu0 0.0
    %345 = vmatpush1.msra.mxu0 0.0
    %346 = vmatprep.subr.mxu0 0.0
    %347 = vmatpush1.msra.mxu0 0.0
    %348 = vmatprep.subr.mxu0 0.0
    %349 = vmatpush1.msra.mxu0 0.0
    %350 = vmatprep.subr.mxu0 0.0
    %351 = vmatpush1.msra.mxu0 0.0
    %352 = vmatprep.subr.mxu0 0.0
    %353 = vmatpush1.msra.mxu0 0.0
    %354 = vmatprep.subr.mxu0 0.0
    %355 = vmatpush1.msra.mxu0 0.0
    %356 = vmatprep.subr.mxu0 0.0
    %357 = vmatpush1.msra.mxu0 0.0
    %358 = vmatprep.subr.mxu0 0.0
    %359 = vmatpush1.msra.mxu0 0.0
    %360 = vmatprep.subr.mxu0 0.0
    %361 = vmatpush1.msra.mxu0 0.0
    %362 = vmatprep.subr.mxu0 0.0
    %363 = vmatpush1.msra.mxu0 0.0
    %364 = vmatprep.subr.mxu0 0.0
    %365 = vmatpush1.msra.mxu0 0.0
    %366 = vmatprep.subr.mxu0 0.0
    %367 = vmatpush1.msra.mxu0 0.0
    %368 = vmatprep.subr.mxu0 0.0
    %369 = vmatpush1.msra.mxu0 0.0
    %370 = vmatprep.mubr.f32.mxu0 0.0
    %371 = vmatmul.mubr.f32.gmra.mrb[0].mxu0 %v99
    %v372 = vpop.f32.mrb[0].mxu0
    %v373 = vadd.f32 %v184, %v372
    %v374 = vpop.f32.mrb[0].mxu0
    %v375 = vadd.f32 %v188, %v374
    %376 = vmatprep.mubr.f32.mxu0 0.0
    %377 = vmatmul.mubr.f32.gmra.mrb[0].mxu0 %v100
    %v378 = vpop.f32.mrb[0].mxu0
    %v379 = vadd.f32 %v184, %v378
    %v380 = vpop.f32.mrb[0].mxu0
    %v381 = vadd.f32 %v188, %v380
    %382 = vmatprep.mubr.f32.mxu0 0.0
    %383 = vmatmul.mubr.f32.gmra.mrb[0].mxu0 %v101
    %v384 = vpop.f32.mrb[0].mxu0
    %v385 = vadd.f32 %v184, %v384
    %v386 = vpop.f32.mrb[0].mxu0
    %v387 = vadd.f32 %v188, %v386
    %388 = vmatprep.mubr.f32.mxu0 0.0
    %389 = vmatmul.mubr.f32.gmra.mrb[0].mxu0 %v102
    %v390 = vpop.f32.mrb[0].mxu0
    %v391 = vadd.f32 %v184, %v390
    %v392 = vpop.f32.mrb[0].mxu0
    %v393 = vadd.f32 %v188, %v392
    %394 = vmatprep.mubr.f32.mxu0 0.0
    %395 = vmatmul.mubr.f32.gmra.mrb[0].mxu0 %v103
    %v396 = vpop.f32.mrb[0].mxu0
    %v397 = vadd.f32 %v184, %v396
    %v398 = vpop.f32.mrb[0].mxu0
    %v399 = vadd.f32 %v188, %v398
    %400 = vmatprep.mubr.f32.mxu0 0.0
    %401 = vmatmul.mubr.f32.gmra.mrb[0].mxu0 %v104
    %v402 = vpop.f32.mrb[0].mxu0
    %v403 = vadd.f32 %v184, %v402
    %v404 = vpop.f32.mrb[0].mxu0
    %v405 = vadd.f32 %v188, %v404
    %406 = vmatprep.mubr.f32.mxu0 0.0
    %407 = vmatmul.mubr.f32.gmra.mrb[0].mxu0 %v105
    %v408 = vpop.f32.mrb[0].mxu0
    %v409 = vadd.f32 %v184, %v408
    %v410 = vpop.f32.mrb[0].mxu0
    %v411 = vadd.f32 %v188, %v410
    %412 = vmatprep.mubr.f32.mxu0 0.0
    %413 = vmatmul.mubr.f32.gmra.mrb[0].mxu0 %v106
    %v414 = vpop.f32.mrb[0].mxu0
    %v415 = vadd.f32 %v184, %v414
    %v416 = vpop.f32.mrb[0].mxu0
    %v417 = vadd.f32 %v188, %v416
    %418 = vdwg.mxu0
    %419 = vst [vmem:[#allocation2] sm:$0xff] %v260
    %420 = vst [vmem:[#allocation2 + $0x8] sm:$0xff] %v262
    %421 = vst [vmem:[#allocation2 + $0x10] sm:$0xff] %v373
    %422 = vst [vmem:[#allocation2 + $0x18] sm:$0xff] %v375
    %423 = vst [vmem:[#allocation2 + $0x20] sm:$0xff] %v266
    %424 = vst [vmem:[#allocation2 + $0x28] sm:$0xff] %v268
    %425 = vst [vmem:[#allocation2 + $0x30] sm:$0xff] %v379
    %426 = vst [vmem:[#allocation2 + $0x38] sm:$0xff] %v381
    %427 = vst [vmem:[#allocation2 + $0x40] sm:$0xff] %v272
    %428 = vst [vmem:[#allocation2 + $0x48] sm:$0xff] %v274
    %429 = vst [vmem:[#allocation2 + $0x50] sm:$0xff] %v385
    %430 = vst [vmem:[#allocation2 + $0x58] sm:$0xff] %v387
    %431 = vst [vmem:[#allocation2 + $0x60] sm:$0xff] %v278
    %432 = vst [vmem:[#allocation2 + $0x68] sm:$0xff] %v280
    %433 = vst [vmem:[#allocation2 + $0x70] sm:$0xff] %v391
    %434 = vst [vmem:[#allocation2 + $0x78] sm:$0xff] %v393
    %435 = vst [vmem:[#allocation2 + $0x80] sm:$0xff] %v284
    %436 = vst [vmem:[#allocation2 + $0x88] sm:$0xff] %v286
    %437 = vst [vmem:[#allocation2 + $0x90] sm:$0xff] %v397
    %438 = vst [vmem:[#allocation2 + $0x98] sm:$0xff] %v399
    %439 = vst [vmem:[#allocation2 + $0xa0] sm:$0xff] %v290
    %440 = vst [vmem:[#allocation2 + $0xa8] sm:$0xff] %v292
    %441 = vst [vmem:[#allocation2 + $0xb0] sm:$0xff] %v403
    %442 = vst [vmem:[#allocation2 + $0xb8] sm:$0xff] %v405
    %443 = vst [vmem:[#allocation2 + $0xc0] sm:$0xff] %v296
    %444 = vst [vmem:[#allocation2 + $0xc8] sm:$0xff] %v298
    %445 = vst [vmem:[#allocation2 + $0xd0] sm:$0xff] %v409
    %446 = vst [vmem:[#allocation2 + $0xd8] sm:$0xff] %v411
    %447 = vst [vmem:[#allocation2 + $0xe0] sm:$0xff] %v302
    %448 = vst [vmem:[#allocation2 + $0xe8] sm:$0xff] %v304
    %449 = vst [vmem:[#allocation2 + $0xf0] sm:$0xff] %v415
    %450 = vst [vmem:[#allocation2 + $0xf8] sm:$0xff] %v417
    %v451 = vld [vmem:[#allocation13] sm:$0xff]
    %v452 = vld [vmem:[#allocation13 + $0x8] sm:$0xff]
    %v453 = vld [vmem:[#allocation13 + $0x10] sm:$0xff]
    %v454 = vld [vmem:[#allocation13 + $0x18] sm:$0xff]
    %v455 = vld [vmem:[#allocation13 + $0x20] sm:$0xff]
    %v456 = vld [vmem:[#allocation13 + $0x28] sm:$0xff]
    %v457 = vld [vmem:[#allocation13 + $0x30] sm:$0xff]
    %v458 = vld [vmem:[#allocation13 + $0x38] sm:$0xff]
    %v459 = vld [vmem:[#allocation13 + $0x40] sm:$0xff]
    %v460 = vld [vmem:[#allocation13 + $0x48] sm:$0xff]
    %v461 = vld [vmem:[#allocation13 + $0x50] sm:$0xff]
    %v462 = vld [vmem:[#allocation13 + $0x58] sm:$0xff]
    %v463 = vld [vmem:[#allocation13 + $0x60] sm:$0xff]
    %v464 = vld [vmem:[#allocation13 + $0x68] sm:$0xff]
    %v465 = vld [vmem:[#allocation13 + $0x70] sm:$0xff]
    %v466 = vld [vmem:[#allocation13 + $0x78] sm:$0xff]
    %v467 = vld [vmem:[#allocation13 + $0x80] sm:$0xff]
    %v468 = vld [vmem:[#allocation13 + $0x88] sm:$0xff]
    %v469 = vld [vmem:[#allocation13 + $0x90] sm:$0xff]
    %v470 = vld [vmem:[#allocation13 + $0x98] sm:$0xff]
    %v471 = vld [vmem:[#allocation13 + $0xa0] sm:$0xff]
    %v472 = vld [vmem:[#allocation13 + $0xa8] sm:$0xff]
    %v473 = vld [vmem:[#allocation13 + $0xb0] sm:$0xff]
    %v474 = vld [vmem:[#allocation13 + $0xb8] sm:$0xff]
    %v475 = vld [vmem:[#allocation13 + $0xc0] sm:$0xff]
    %v476 = vld [vmem:[#allocation13 + $0xc8] sm:$0xff]
    %v477 = vld [vmem:[#allocation13 + $0xd0] sm:$0xff]
    %v478 = vld [vmem:[#allocation13 + $0xd8] sm:$0xff]
    %v479 = vld [vmem:[#allocation13 + $0xe0] sm:$0xff]
    %v480 = vld [vmem:[#allocation13 + $0xe8] sm:$0xff]
    %v481 = vld [vmem:[#allocation13 + $0xf0] sm:$0xff]
    %v482 = vld [vmem:[#allocation13 + $0xf8] sm:$0xff]
    %v483 = vld [vmem:[#allocation13 + $0x100] sm:$0xff]
    %v484 = vld [vmem:[#allocation13 + $0x108] sm:$0xff]
    %v485 = vld [vmem:[#allocation13 + $0x110] sm:$0xff]
    %v486 = vld [vmem:[#allocation13 + $0x118] sm:$0xff]
    %v487 = vld [vmem:[#allocation13 + $0x120] sm:$0xff]
    %v488 = vld [vmem:[#allocation13 + $0x128] sm:$0xff]
    %v489 = vld [vmem:[#allocation13 + $0x130] sm:$0xff]
    %v490 = vld [vmem:[#allocation13 + $0x138] sm:$0xff]
    %v491 = vld [vmem:[#allocation13 + $0x140] sm:$0xff]
    %v492 = vld [vmem:[#allocation13 + $0x148] sm:$0xff]
    %v493 = vld [vmem:[#allocation13 + $0x150] sm:$0xff]
    %v494 = vld [vmem:[#allocation13 + $0x158] sm:$0xff]
    %v495 = vld [vmem:[#allocation13 + $0x160] sm:$0xff]
    %v496 = vld [vmem:[#allocation13 + $0x168] sm:$0xff]
    %v497 = vld [vmem:[#allocation13 + $0x170] sm:$0xff]
    %v498 = vld [vmem:[#allocation13 + $0x178] sm:$0xff]
    %v499 = vld [vmem:[#allocation13 + $0x180] sm:$0xff]
    %v500 = vld [vmem:[#allocation13 + $0x188] sm:$0xff]
    %v501 = vld [vmem:[#allocation13 + $0x190] sm:$0xff]
    %v502 = vld [vmem:[#allocation13 + $0x198] sm:$0xff]
    %v503 = vld [vmem:[#allocation13 + $0x1a0] sm:$0xff]
    %v504 = vld [vmem:[#allocation13 + $0x1a8] sm:$0xff]
    %v505 = vld [vmem:[#allocation13 + $0x1b0] sm:$0xff]
    %v506 = vld [vmem:[#allocation13 + $0x1b8] sm:$0xff]
    %v507 = vld [vmem:[#allocation13 + $0x1c0] sm:$0xff]
    %v508 = vld [vmem:[#allocation13 + $0x1c8] sm:$0xff]
    %v509 = vld [vmem:[#allocation13 + $0x1d0] sm:$0xff]
    %v510 = vld [vmem:[#allocation13 + $0x1d8] sm:$0xff]
    %v511 = vld [vmem:[#allocation13 + $0x1e0] sm:$0xff]
    %v512 = vld [vmem:[#allocation13 + $0x1e8] sm:$0xff]
    %v513 = vld [vmem:[#allocation13 + $0x1f0] sm:$0xff]
    %v514 = vld [vmem:[#allocation13 + $0x1f8] sm:$0xff]
    %v515 = vld [vmem:[#allocation3] sm:$0xff]
    %v516 = vld [vmem:[#allocation4] sm:$0xff]
    %v517 = vld [vmem:[#allocation2] sm:$0xff]
    %v518 = vld [vmem:[#allocation2 + $0x8] sm:$0xff]
    %v519 = vld [vmem:[#allocation2 + $0x10] sm:$0xff]
    %v520 = vld [vmem:[#allocation2 + $0x18] sm:$0xff]
    %521 = vmatprep.subr.mxu0 %v452
    %522 = vmatpush1.msra.mxu0 %v451
    %523 = vmatprep.subr.mxu0 %v456
    %524 = vmatpush1.msra.mxu0 %v455
    %525 = vmatprep.subr.mxu0 %v460
    %526 = vmatpush1.msra.mxu0 %v459
    %527 = vmatprep.subr.mxu0 %v464
    %528 = vmatpush1.msra.mxu0 %v463
    %529 = vmatprep.subr.mxu0 %v468
    %530 = vmatpush1.msra.mxu0 %v467
    %531 = vmatprep.subr.mxu0 %v472
    %532 = vmatpush1.msra.mxu0 %v471
    %533 = vmatprep.subr.mxu0 %v476
    %534 = vmatpush1.msra.mxu0 %v475
    %535 = vmatprep.subr.mxu0 %v480
    %536 = vmatpush1.msra.mxu0 %v479
    %537 = vmatprep.subr.mxu0 %v484
    %538 = vmatpush1.msra.mxu0 %v483
    %539 = vmatprep.subr.mxu0 %v488
    %540 = vmatpush1.msra.mxu0 %v487
    %541 = vmatprep.subr.mxu0 %v492
    %542 = vmatpush1.msra.mxu0 %v491
    %543 = vmatprep.subr.mxu0 %v496
    %544 = vmatpush1.msra.mxu0 %v495
    %545 = vmatprep.subr.mxu0 %v500
    %546 = vmatpush1.msra.mxu0 %v499
    %547 = vmatprep.subr.mxu0 %v504
    %548 = vmatpush1.msra.mxu0 %v503
    %549 = vmatprep.subr.mxu0 %v508
    %550 = vmatpush1.msra.mxu0 %v507
    %551 = vmatprep.subr.mxu0 %v512
    %552 = vmatpush1.msra.mxu0 %v511
    %553 = vmatprep.subr.mxu0 0.0
    %554 = vmatpush1.msra.mxu0 0.0
    %555 = vmatprep.subr.mxu0 0.0
    %556 = vmatpush1.msra.mxu0 0.0
    %557 = vmatprep.subr.mxu0 0.0
    %558 = vmatpush1.msra.mxu0 0.0
    %559 = vmatprep.subr.mxu0 0.0
    %560 = vmatpush1.msra.mxu0 0.0
    %561 = vmatprep.subr.mxu0 0.0
    %562 = vmatpush1.msra.mxu0 0.0
    %563 = vmatprep.subr.mxu0 0.0
    %564 = vmatpush1.msra.mxu0 0.0
    %565 = vmatprep.subr.mxu0 0.0
    %566 = vmatpush1.msra.mxu0 0.0
    %567 = vmatprep.subr.mxu0 0.0
    %568 = vmatpush1.msra.mxu0 0.0
    %569 = vmatprep.subr.mxu0 0.0
    %570 = vmatpush1.msra.mxu0 0.0
    %571 = vmatprep.subr.mxu0 0.0
    %572 = vmatpush1.msra.mxu0 0.0
    %573 = vmatprep.subr.mxu0 0.0
    %574 = vmatpush1.msra.mxu0 0.0
    %575 = vmatprep.subr.mxu0 0.0
    %576 = vmatpush1.msra.mxu0 0.0
    %577 = vmatprep.subr.mxu0 0.0
    %578 = vmatpush1.msra.mxu0 0.0
    %579 = vmatprep.subr.mxu0 0.0
    %580 = vmatpush1.msra.mxu0 0.0
    %581 = vmatprep.subr.mxu0 0.0
    %582 = vmatpush1.msra.mxu0 0.0
    %583 = vmatprep.subr.mxu0 0.0
    %584 = vmatpush1.msra.mxu0 0.0
    %585 = vmatprep.mubr.f32.mxu0 0.0
    %586 = vmatmul.mubr.f32.gmra.mrb[0].mxu0 %v515
    %v587 = vpop.f32.mrb[0].mxu0
    %v588 = vadd.f32 0.0, %v587
    %v589 = vpop.f32.mrb[0].mxu0
    %v590 = vadd.f32 0.0, %v589
    %591 = vdwg.mxu0
    %592 = vmatprep.subr.mxu0 %v454
    %593 = vmatpush1.msra.mxu0 %v453
    %594 = vmatprep.subr.mxu0 %v458
    %595 = vmatpush1.msra.mxu0 %v457
    %596 = vmatprep.subr.mxu0 %v462
    %597 = vmatpush1.msra.mxu0 %v461
    %598 = vmatprep.subr.mxu0 %v466
    %599 = vmatpush1.msra.mxu0 %v465
    %600 = vmatprep.subr.mxu0 %v470
    %601 = vmatpush1.msra.mxu0 %v469
    %602 = vmatprep.subr.mxu0 %v474
    %603 = vmatpush1.msra.mxu0 %v473
    %604 = vmatprep.subr.mxu0 %v478
    %605 = vmatpush1.msra.mxu0 %v477
    %606 = vmatprep.subr.mxu0 %v482
    %607 = vmatpush1.msra.mxu0 %v481
    %608 = vmatprep.subr.mxu0 %v486
    %609 = vmatpush1.msra.mxu0 %v485
    %610 = vmatprep.subr.mxu0 %v490
    %611 = vmatpush1.msra.mxu0 %v489
    %612 = vmatprep.subr.mxu0 %v494
    %613 = vmatpush1.msra.mxu0 %v493
    %614 = vmatprep.subr.mxu0 %v498
    %615 = vmatpush1.msra.mxu0 %v497
    %616 = vmatprep.subr.mxu0 %v502
    %617 = vmatpush1.msra.mxu0 %v501
    %618 = vmatprep.subr.mxu0 %v506
    %619 = vmatpush1.msra.mxu0 %v505
    %620 = vmatprep.subr.mxu0 %v510
    %621 = vmatpush1.msra.mxu0 %v509
    %622 = vmatprep.subr.mxu0 %v514
    %623 = vmatpush1.msra.mxu0 %v513
    %624 = vmatprep.subr.mxu0 0.0
    %625 = vmatpush1.msra.mxu0 0.0
    %626 = vmatprep.subr.mxu0 0.0
    %627 = vmatpush1.msra.mxu0 0.0
    %628 = vmatprep.subr.mxu0 0.0
    %629 = vmatpush1.msra.mxu0 0.0
    %630 = vmatprep.subr.mxu0 0.0
    %631 = vmatpush1.msra.mxu0 0.0
    %632 = vmatprep.subr.mxu0 0.0
    %633 = vmatpush1.msra.mxu0 0.0
    %634 = vmatprep.subr.mxu0 0.0
    %635 = vmatpush1.msra.mxu0 0.0
    %636 = vmatprep.subr.mxu0 0.0
    %637 = vmatpush1.msra.mxu0 0.0
    %638 = vmatprep.subr.mxu0 0.0
    %639 = vmatpush1.msra.mxu0 0.0
    %640 = vmatprep.subr.mxu0 0.0
    %641 = vmatpush1.msra.mxu0 0.0
    %642 = vmatprep.subr.mxu0 0.0
    %643 = vmatpush1.msra.mxu0 0.0
    %644 = vmatprep.subr.mxu0 0.0
    %645 = vmatpush1.msra.mxu0 0.0
    %646 = vmatprep.subr.mxu0 0.0
    %647 = vmatpush1.msra.mxu0 0.0
    %648 = vmatprep.subr.mxu0 0.0
    %649 = vmatpush1.msra.mxu0 0.0
    %650 = vmatprep.subr.mxu0 0.0
    %651 = vmatpush1.msra.mxu0 0.0
    %652 = vmatprep.subr.mxu0 0.0
    %653 = vmatpush1.msra.mxu0 0.0
    %654 = vmatprep.subr.mxu0 0.0
    %655 = vmatpush1.msra.mxu0 0.0
    %656 = vmatprep.mubr.f32.mxu0 0.0
    %657 = vmatmul.mubr.f32.gmra.mrb[0].mxu0 %v515
    %v658 = vpop.f32.mrb[0].mxu0
    %v659 = vadd.f32 0.0, %v658
    %v660 = vpop.f32.mrb[0].mxu0
    %v661 = vadd.f32 0.0, %v660
    %662 = vdwg.mxu0
    %v663 = vadd.f32 %v517, %v588
    %v664 = vadd.f32 %v518, %v590
    %v665 = vadd.f32 %v519, %v659
    %v666 = vadd.f32 %v520, %v661
    %v667 = vmul.f32 %v663, 0.5
    %v668 = vtanh.pop %v667
    %v669 = vadd.f32 %v668, 1.0
    %v670 = vmul.f32 %v669, 0.5
    %v671 = vmul.f32 %v664, 0.5
    %v672 = vtanh.pop %v671
    %v673 = vadd.f32 %v672, 1.0
    %v674 = vmul.f32 %v673, 0.5
    %v675 = vtanh.pop %v665
    %v676 = vmul.f32 %v666, 0.5
    %v677 = vtanh.pop %v676
    %v678 = vadd.f32 %v677, 1.0
    %v679 = vmul.f32 %v678, 0.5
    %v680 = vmul.f32 %v674, %v516
    %v681 = vmul.f32 %v670, %v675
    %v682 = vadd.f32 %v680, %v681
    %v683 = vtanh.pop %v682
    %v684 = vmul.f32 %v679, %v683
    %685 = vst [vmem:[#allocation14] sm:$0xff] %v684
    %s686 = scalar_lea.vmem [#allocation2], 32
    %v687 = vld [vmem:[%s686] sm:$0xff]
    %v688 = vld [vmem:[%s686 + $0x8] sm:$0xff]
    %v689 = vld [vmem:[%s686 + $0x10] sm:$0xff]
    %v690 = vld [vmem:[%s686 + $0x18] sm:$0xff]
    %691 = vmatprep.subr.mxu0 %v452
    %692 = vmatpush1.msra.mxu0 %v451
    %693 = vmatprep.subr.mxu0 %v456
    %694 = vmatpush1.msra.mxu0 %v455
    %695 = vmatprep.subr.mxu0 %v460
    %696 = vmatpush1.msra.mxu0 %v459
    %697 = vmatprep.subr.mxu0 %v464
    %698 = vmatpush1.msra.mxu0 %v463
    %699 = vmatprep.subr.mxu0 %v468
    %700 = vmatpush1.msra.mxu0 %v467
    %701 = vmatprep.subr.mxu0 %v472
    %702 = vmatpush1.msra.mxu0 %v471
    %703 = vmatprep.subr.mxu0 %v476
    %704 = vmatpush1.msra.mxu0 %v475
    %705 = vmatprep.subr.mxu0 %v480
    %706 = vmatpush1.msra.mxu0 %v479
    %707 = vmatprep.subr.mxu0 %v484
    %708 = vmatpush1.msra.mxu0 %v483
    %709 = vmatprep.subr.mxu0 %v488
    %710 = vmatpush1.msra.mxu0 %v487
    %711 = vmatprep.subr.mxu0 %v492
    %712 = vmatpush1.msra.mxu0 %v491
    %713 = vmatprep.subr.mxu0 %v496
    %714 = vmatpush1.msra.mxu0 %v495
    %715 = vmatprep.subr.mxu0 %v500
    %716 = vmatpush1.msra.mxu0 %v499
    %717 = vmatprep.subr.mxu0 %v504
    %718 = vmatpush1.msra.mxu0 %v503
    %719 = vmatprep.subr.mxu0 %v508
    %720 = vmatpush1.msra.mxu0 %v507
    %721 = vmatprep.subr.mxu0 %v512
    %722 = vmatpush1.msra.mxu0 %v511
    %723 = vmatprep.subr.mxu0 0.0
    %724 = vmatpush1.msra.mxu0 0.0
    %725 = vmatprep.subr.mxu0 0.0
    %726 = vmatpush1.msra.mxu0 0.0
    %727 = vmatprep.subr.mxu0 0.0
    %728 = vmatpush1.msra.mxu0 0.0
    %729 = vmatprep.subr.mxu0 0.0
    %730 = vmatpush1.msra.mxu0 0.0
    %731 = vmatprep.subr.mxu0 0.0
    %732 = vmatpush1.msra.mxu0 0.0
    %733 = vmatprep.subr.mxu0 0.0
    %734 = vmatpush1.msra.mxu0 0.0
    %735 = vmatprep.subr.mxu0 0.0
    %736 = vmatpush1.msra.mxu0 0.0
    %737 = vmatprep.subr.mxu0 0.0
    %738 = vmatpush1.msra.mxu0 0.0
    %739 = vmatprep.subr.mxu0 0.0
    %740 = vmatpush1.msra.mxu0 0.0
    %741 = vmatprep.subr.mxu0 0.0
    %742 = vmatpush1.msra.mxu0 0.0
    %743 = vmatprep.subr.mxu0 0.0
    %744 = vmatpush1.msra.mxu0 0.0
    %745 = vmatprep.subr.mxu0 0.0
    %746 = vmatpush1.msra.mxu0 0.0
    %747 = vmatprep.subr.mxu0 0.0
    %748 = vmatpush1.msra.mxu0 0.0
    %749 = vmatprep.subr.mxu0 0.0
    %750 = vmatpush1.msra.mxu0 0.0
    %751 = vmatprep.subr.mxu0 0.0
    %752 = vmatpush1.msra.mxu0 0.0
    %753 = vmatprep.subr.mxu0 0.0
    %754 = vmatpush1.msra.mxu0 0.0
    %755 = vmatprep.mubr.f32.mxu0 0.0
    %756 = vmatmul.mubr.f32.gmra.mrb[0].mxu0 %v684
    %v757 = vpop.f32.mrb[0].mxu0
    %v758 = vadd.f32 0.0, %v757
    %v759 = vpop.f32.mrb[0].mxu0
    %v760 = vadd.f32 0.0, %v759
    %761 = vdwg.mxu0
    %762 = vmatprep.subr.mxu0 %v454
    %763 = vmatpush1.msra.mxu0 %v453
    %764 = vmatprep.subr.mxu0 %v458
    %765 = vmatpush1.msra.mxu0 %v457
    %766 = vmatprep.subr.mxu0 %v462
    %767 = vmatpush1.msra.mxu0 %v461
    %768 = vmatprep.subr.mxu0 %v466
    %769 = vmatpush1.msra.mxu0 %v465
    %770 = vmatprep.subr.mxu0 %v470
    %771 = vmatpush1.msra.mxu0 %v469
    %772 = vmatprep.subr.mxu0 %v474
    %773 = vmatpush1.msra.mxu0 %v473
    %774 = vmatprep.subr.mxu0 %v478
    %775 = vmatpush1.msra.mxu0 %v477
    %776 = vmatprep.subr.mxu0 %v482
    %777 = vmatpush1.msra.mxu0 %v481
    %778 = vmatprep.subr.mxu0 %v486
    %779 = vmatpush1.msra.mxu0 %v485
    %780 = vmatprep.subr.mxu0 %v490
    %781 = vmatpush1.msra.mxu0 %v489
    %782 = vmatprep.subr.mxu0 %v494
    %783 = vmatpush1.msra.mxu0 %v493
    %784 = vmatprep.subr.mxu0 %v498
    %785 = vmatpush1.msra.mxu0 %v497
    %786 = vmatprep.subr.mxu0 %v502
    %787 = vmatpush1.msra.mxu0 %v501
    %788 = vmatprep.subr.mxu0 %v506
    %789 = vmatpush1.msra.mxu0 %v505
    %790 = vmatprep.subr.mxu0 %v510
    %791 = vmatpush1.msra.mxu0 %v509
    %792 = vmatprep.subr.mxu0 %v514
    %793 = vmatpush1.msra.mxu0 %v513
    %794 = vmatprep.subr.mxu0 0.0
    %795 = vmatpush1.msra.mxu0 0.0
    %796 = vmatprep.subr.mxu0 0.0
    %797 = vmatpush1.msra.mxu0 0.0
    %798 = vmatprep.subr.mxu0 0.0
    %799 = vmatpush1.msra.mxu0 0.0
    %800 = vmatprep.subr.mxu0 0.0
    %801 = vmatpush1.msra.mxu0 0.0
    %802 = vmatprep.subr.mxu0 0.0
    %803 = vmatpush1.msra.mxu0 0.0
    %804 = vmatprep.subr.mxu0 0.0
    %805 = vmatpush1.msra.mxu0 0.0
    %806 = vmatprep.subr.mxu0 0.0
    %807 = vmatpush1.msra.mxu0 0.0
    %808 = vmatprep.subr.mxu0 0.0
    %809 = vmatpush1.msra.mxu0 0.0
    %810 = vmatprep.subr.mxu0 0.0
    %811 = vmatpush1.msra.mxu0 0.0
    %812 = vmatprep.subr.mxu0 0.0
    %813 = vmatpush1.msra.mxu0 0.0
    %814 = vmatprep.subr.mxu0 0.0
    %815 = vmatpush1.msra.mxu0 0.0
    %816 = vmatprep.subr.mxu0 0.0
    %817 = vmatpush1.msra.mxu0 0.0
    %818 = vmatprep.subr.mxu0 0.0
    %819 = vmatpush1.msra.mxu0 0.0
    %820 = vmatprep.subr.mxu0 0.0
    %821 = vmatpush1.msra.mxu0 0.0
    %822 = vmatprep.subr.mxu0 0.0
    %823 = vmatpush1.msra.mxu0 0.0
    %824 = vmatprep.subr.mxu0 0.0
    %825 = vmatpush1.msra.mxu0 0.0
    %826 = vmatprep.mubr.f32.mxu0 0.0
    %827 = vmatmul.mubr.f32.gmra.mrb[0].mxu0 %v684
    %v828 = vpop.f32.mrb[0].mxu0
    %v829 = vadd.f32 0.0, %v828
    %v830 = vpop.f32.mrb[0].mxu0
    %v831 = vadd.f32 0.0, %v830
    %832 = vdwg.mxu0
    %v833 = vadd.f32 %v687, %v758
    %v834 = vadd.f32 %v688, %v760
    %v835 = vadd.f32 %v689, %v829
    %v836 = vadd.f32 %v690, %v831
    %v837 = vmul.f32 %v833, 0.5
    %v838 = vtanh.pop %v837
    %v839 = vadd.f32 %v838, 1.0
    %v840 = vmul.f32 %v839, 0.5
    %v841 = vmul.f32 %v834, 0.5
    %v842 = vtanh.pop %v841
    %v843 = vadd.f32 %v842, 1.0
    %v844 = vmul.f32 %v843, 0.5
    %v845 = vtanh.pop %v835
    %v846 = vmul.f32 %v836, 0.5
    %v847 = vtanh.pop %v846
    %v848 = vadd.f32 %v847, 1.0
    %v849 = vmul.f32 %v848, 0.5
    %v850 = vmul.f32 %v844, %v682
    %v851 = vmul.f32 %v840, %v845
    %v852 = vadd.f32 %v850, %v851
    %v853 = vtanh.pop %v852
    %v854 = vmul.f32 %v849, %v853
    %s855 = scalar_lea.vmem [#allocation14], 8
    %856 = vst [vmem:[%s855] sm:$0xff] %v854
    %s857 = scalar_lea.vmem [#allocation2], 64
    %v858 = vld [vmem:[%s857] sm:$0xff]
    %v859 = vld [vmem:[%s857 + $0x8] sm:$0xff]
    %v860 = vld [vmem:[%s857 + $0x10] sm:$0xff]
    %v861 = vld [vmem:[%s857 + $0x18] sm:$0xff]
    %862 = vmatprep.subr.mxu0 %v452
    %863 = vmatpush1.msra.mxu0 %v451
    %864 = vmatprep.subr.mxu0 %v456
    %865 = vmatpush1.msra.mxu0 %v455
    %866 = vmatprep.subr.mxu0 %v460
    %867 = vmatpush1.msra.mxu0 %v459
    %868 = vmatprep.subr.mxu0 %v464
    %869 = vmatpush1.msra.mxu0 %v463
    %870 = vmatprep.subr.mxu0 %v468
    %871 = vmatpush1.msra.mxu0 %v467
    %872 = vmatprep.subr.mxu0 %v472
    %873 = vmatpush1.msra.mxu0 %v471
    %874 = vmatprep.subr.mxu0 %v476
    %875 = vmatpush1.msra.mxu0 %v475
    %876 = vmatprep.subr.mxu0 %v480
    %877 = vmatpush1.msra.mxu0 %v479
    %878 = vmatprep.subr.mxu0 %v484
    %879 = vmatpush1.msra.mxu0 %v483
    %880 = vmatprep.subr.mxu0 %v488
    %881 = vmatpush1.msra.mxu0 %v487
    %882 = vmatprep.subr.mxu0 %v492
    %883 = vmatpush1.msra.mxu0 %v491
    %884 = vmatprep.subr.mxu0 %v496
    %885 = vmatpush1.msra.mxu0 %v495
    %886 = vmatprep.subr.mxu0 %v500
    %887 = vmatpush1.msra.mxu0 %v499
    %888 = vmatprep.subr.mxu0 %v504
    %889 = vmatpush1.msra.mxu0 %v503
    %890 = vmatprep.subr.mxu0 %v508
    %891 = vmatpush1.msra.mxu0 %v507
    %892 = vmatprep.subr.mxu0 %v512
    %893 = vmatpush1.msra.mxu0 %v511
    %894 = vmatprep.subr.mxu0 0.0
    %895 = vmatpush1.msra.mxu0 0.0
    %896 = vmatprep.subr.mxu0 0.0
    %897 = vmatpush1.msra.mxu0 0.0
    %898 = vmatprep.subr.mxu0 0.0
    %899 = vmatpush1.msra.mxu0 0.0
    %900 = vmatprep.subr.mxu0 0.0
    %901 = vmatpush1.msra.mxu0 0.0
    %902 = vmatprep.subr.mxu0 0.0
    %903 = vmatpush1.msra.mxu0 0.0
    %904 = vmatprep.subr.mxu0 0.0
    %905 = vmatpush1.msra.mxu0 0.0
    %906 = vmatprep.subr.mxu0 0.0
    %907 = vmatpush1.msra.mxu0 0.0
    %908 = vmatprep.subr.mxu0 0.0
    %909 = vmatpush1.msra.mxu0 0.0
    %910 = vmatprep.subr.mxu0 0.0
    %911 = vmatpush1.msra.mxu0 0.0
    %912 = vmatprep.subr.mxu0 0.0
    %913 = vmatpush1.msra.mxu0 0.0
    %914 = vmatprep.subr.mxu0 0.0
    %915 = vmatpush1.msra.mxu0 0.0
    %916 = vmatprep.subr.mxu0 0.0
    %917 = vmatpush1.msra.mxu0 0.0
    %918 = vmatprep.subr.mxu0 0.0
    %919 = vmatpush1.msra.mxu0 0.0
    %920 = vmatprep.subr.mxu0 0.0
    %921 = vmatpush1.msra.mxu0 0.0
    %922 = vmatprep.subr.mxu0 0.0
    %923 = vmatpush1.msra.mxu0 0.0
    %924 = vmatprep.subr.mxu0 0.0
    %925 = vmatpush1.msra.mxu0 0.0
    %926 = vmatprep.mubr.f32.mxu0 0.0
    %927 = vmatmul.mubr.f32.gmra.mrb[0].mxu0 %v854
    %v928 = vpop.f32.mrb[0].mxu0
    %v929 = vadd.f32 0.0, %v928
    %v930 = vpop.f32.mrb[0].mxu0
    %v931 = vadd.f32 0.0, %v930
    %932 = vdwg.mxu0
    %933 = vmatprep.subr.mxu0 %v454
    %934 = vmatpush1.msra.mxu0 %v453
    %935 = vmatprep.subr.mxu0 %v458
    %936 = vmatpush1.msra.mxu0 %v457
    %937 = vmatprep.subr.mxu0 %v462
    %938 = vmatpush1.msra.mxu0 %v461
    %939 = vmatprep.subr.mxu0 %v466
    %940 = vmatpush1.msra.mxu0 %v465
    %941 = vmatprep.subr.mxu0 %v470
    %942 = vmatpush1.msra.mxu0 %v469
    %943 = vmatprep.subr.mxu0 %v474
    %944 = vmatpush1.msra.mxu0 %v473
    %945 = vmatprep.subr.mxu0 %v478
    %946 = vmatpush1.msra.mxu0 %v477
    %947 = vmatprep.subr.mxu0 %v482
    %948 = vmatpush1.msra.mxu0 %v481
    %949 = vmatprep.subr.mxu0 %v486
    %950 = vmatpush1.msra.mxu0 %v485
    %951 = vmatprep.subr.mxu0 %v490
    %952 = vmatpush1.msra.mxu0 %v489
    %953 = vmatprep.subr.mxu0 %v494
    %954 = vmatpush1.msra.mxu0 %v493
    %955 = vmatprep.subr.mxu0 %v498
    %956 = vmatpush1.msra.mxu0 %v497
    %957 = vmatprep.subr.mxu0 %v502
    %958 = vmatpush1.msra.mxu0 %v501
    %959 = vmatprep.subr.mxu0 %v506
    %960 = vmatpush1.msra.mxu0 %v505
    %961 = vmatprep.subr.mxu0 %v510
    %962 = vmatpush1.msra.mxu0 %v509
    %963 = vmatprep.subr.mxu0 %v514
    %964 = vmatpush1.msra.mxu0 %v513
    %965 = vmatprep.subr.mxu0 0.0
    %966 = vmatpush1.msra.mxu0 0.0
    %967 = vmatprep.subr.mxu0 0.0
    %968 = vmatpush1.msra.mxu0 0.0
    %969 = vmatprep.subr.mxu0 0.0
    %970 = vmatpush1.msra.mxu0 0.0
    %971 = vmatprep.subr.mxu0 0.0
    %972 = vmatpush1.msra.mxu0 0.0
    %973 = vmatprep.subr.mxu0 0.0
    %974 = vmatpush1.msra.mxu0 0.0
    %975 = vmatprep.subr.mxu0 0.0
    %976 = vmatpush1.msra.mxu0 0.0
    %977 = vmatprep.subr.mxu0 0.0
    %978 = vmatpush1.msra.mxu0 0.0
    %979 = vmatprep.subr.mxu0 0.0
    %980 = vmatpush1.msra.mxu0 0.0
    %981 = vmatprep.subr.mxu0 0.0
    %982 = vmatpush1.msra.mxu0 0.0
    %983 = vmatprep.subr.mxu0 0.0
    %984 = vmatpush1.msra.mxu0 0.0
    %985 = vmatprep.subr.mxu0 0.0
    %986 = vmatpush1.msra.mxu0 0.0
    %987 = vmatprep.subr.mxu0 0.0
    %988 = vmatpush1.msra.mxu0 0.0
    %989 = vmatprep.subr.mxu0 0.0
    %990 = vmatpush1.msra.mxu0 0.0
    %991 = vmatprep.subr.mxu0 0.0
    %992 = vmatpush1.msra.mxu0 0.0
    %993 = vmatprep.subr.mxu0 0.0
    %994 = vmatpush1.msra.mxu0 0.0
    %995 = vmatprep.subr.mxu0 0.0
    %996 = vmatpush1.msra.mxu0 0.0
    %997 = vmatprep.mubr.f32.mxu0 0.0
    %998 = vmatmul.mubr.f32.gmra.mrb[0].mxu0 %v854
    %v999 = vpop.f32.mrb[0].mxu0
    %v1000 = vadd.f32 0.0, %v999
    %v1001 = vpop.f32.mrb[0].mxu0
    %v1002 = vadd.f32 0.0, %v1001
    %1003 = vdwg.mxu0
    %v1004 = vadd.f32 %v858, %v929
    %v1005 = vadd.f32 %v859, %v931
    %v1006 = vadd.f32 %v860, %v1000
    %v1007 = vadd.f32 %v861, %v1002
    %v1008 = vmul.f32 %v1004, 0.5
    %v1009 = vtanh.pop %v1008
    %v1010 = vadd.f32 %v1009, 1.0
    %v1011 = vmul.f32 %v1010, 0.5
    %v1012 = vmul.f32 %v1005, 0.5
    %v1013 = vtanh.pop %v1012
    %v1014 = vadd.f32 %v1013, 1.0
    %v1015 = vmul.f32 %v1014, 0.5
    %v1016 = vtanh.pop %v1006
    %v1017 = vmul.f32 %v1007, 0.5
    %v1018 = vtanh.pop %v1017
    %v1019 = vadd.f32 %v1018, 1.0
    %v1020 = vmul.f32 %v1019, 0.5
    %v1021 = vmul.f32 %v1015, %v852
    %v1022 = vmul.f32 %v1011, %v1016
    %v1023 = vadd.f32 %v1021, %v1022
    %v1024 = vtanh.pop %v1023
    %v1025 = vmul.f32 %v1020, %v1024
    %s1026 = scalar_lea.vmem [#allocation14], 16
    %1027 = vst [vmem:[%s1026] sm:$0xff] %v1025
    %s1028 = scalar_lea.vmem [#allocation2], 96
    %v1029 = vld [vmem:[%s1028] sm:$0xff]
    %v1030 = vld [vmem:[%s1028 + $0x8] sm:$0xff]
    %v1031 = vld [vmem:[%s1028 + $0x10] sm:$0xff]
    %v1032 = vld [vmem:[%s1028 + $0x18] sm:$0xff]
    %1033 = vmatprep.subr.mxu0 %v452
    %1034 = vmatpush1.msra.mxu0 %v451
    %1035 = vmatprep.subr.mxu0 %v456
    %1036 = vmatpush1.msra.mxu0 %v455
    %1037 = vmatprep.subr.mxu0 %v460
    %1038 = vmatpush1.msra.mxu0 %v459
    %1039 = vmatprep.subr.mxu0 %v464
    %1040 = vmatpush1.msra.mxu0 %v463
    %1041 = vmatprep.subr.mxu0 %v468
    %1042 = vmatpush1.msra.mxu0 %v467
    %1043 = vmatprep.subr.mxu0 %v472
    %1044 = vmatpush1.msra.mxu0 %v471
    %1045 = vmatprep.subr.mxu0 %v476
    %1046 = vmatpush1.msra.mxu0 %v475
    %1047 = vmatprep.subr.mxu0 %v480
    %1048 = vmatpush1.msra.mxu0 %v479
    %1049 = vmatprep.subr.mxu0 %v484
    %1050 = vmatpush1.msra.mxu0 %v483
    %1051 = vmatprep.subr.mxu0 %v488
    %1052 = vmatpush1.msra.mxu0 %v487
    %1053 = vmatprep.subr.mxu0 %v492
    %1054 = vmatpush1.msra.mxu0 %v491
    %1055 = vmatprep.subr.mxu0 %v496
    %1056 = vmatpush1.msra.mxu0 %v495
    %1057 = vmatprep.subr.mxu0 %v500
    %1058 = vmatpush1.msra.mxu0 %v499
    %1059 = vmatprep.subr.mxu0 %v504
    %1060 = vmatpush1.msra.mxu0 %v503
    %1061 = vmatprep.subr.mxu0 %v508
    %1062 = vmatpush1.msra.mxu0 %v507
    %1063 = vmatprep.subr.mxu0 %v512
    %1064 = vmatpush1.msra.mxu0 %v511
    %1065 = vmatprep.subr.mxu0 0.0
    %1066 = vmatpush1.msra.mxu0 0.0
    %1067 = vmatprep.subr.mxu0 0.0
    %1068 = vmatpush1.msra.mxu0 0.0
    %1069 = vmatprep.subr.mxu0 0.0
    %1070 = vmatpush1.msra.mxu0 0.0
    %1071 = vmatprep.subr.mxu0 0.0
    %1072 = vmatpush1.msra.mxu0 0.0
    %1073 = vmatprep.subr.mxu0 0.0
    %1074 = vmatpush1.msra.mxu0 0.0
    %1075 = vmatprep.subr.mxu0 0.0
    %1076 = vmatpush1.msra.mxu0 0.0
    %1077 = vmatprep.subr.mxu0 0.0
    %1078 = vmatpush1.msra.mxu0 0.0
    %1079 = vmatprep.subr.mxu0 0.0
    %1080 = vmatpush1.msra.mxu0 0.0
    %1081 = vmatprep.subr.mxu0 0.0
    %1082 = vmatpush1.msra.mxu0 0.0
    %1083 = vmatprep.subr.mxu0 0.0
    %1084 = vmatpush1.msra.mxu0 0.0
    %1085 = vmatprep.subr.mxu0 0.0
    %1086 = vmatpush1.msra.mxu0 0.0
    %1087 = vmatprep.subr.mxu0 0.0
    %1088 = vmatpush1.msra.mxu0 0.0
    %1089 = vmatprep.subr.mxu0 0.0
    %1090 = vmatpush1.msra.mxu0 0.0
    %1091 = vmatprep.subr.mxu0 0.0
    %1092 = vmatpush1.msra.mxu0 0.0
    %1093 = vmatprep.subr.mxu0 0.0
    %1094 = vmatpush1.msra.mxu0 0.0
    %1095 = vmatprep.subr.mxu0 0.0
    %1096 = vmatpush1.msra.mxu0 0.0
    %1097 = vmatprep.mubr.f32.mxu0 0.0
    %1098 = vmatmul.mubr.f32.gmra.mrb[0].mxu0 %v1025
    %v1099 = vpop.f32.mrb[0].mxu0
    %v1100 = vadd.f32 0.0, %v1099
    %v1101 = vpop.f32.mrb[0].mxu0
    %v1102 = vadd.f32 0.0, %v1101
    %1103 = vdwg.mxu0
    %1104 = vmatprep.subr.mxu0 %v454
    %1105 = vmatpush1.msra.mxu0 %v453
    %1106 = vmatprep.subr.mxu0 %v458
    %1107 = vmatpush1.msra.mxu0 %v457
    %1108 = vmatprep.subr.mxu0 %v462
    %1109 = vmatpush1.msra.mxu0 %v461
    %1110 = vmatprep.subr.mxu0 %v466
    %1111 = vmatpush1.msra.mxu0 %v465
    %1112 = vmatprep.subr.mxu0 %v470
    %1113 = vmatpush1.msra.mxu0 %v469
    %1114 = vmatprep.subr.mxu0 %v474
    %1115 = vmatpush1.msra.mxu0 %v473
    %1116 = vmatprep.subr.mxu0 %v478
    %1117 = vmatpush1.msra.mxu0 %v477
    %1118 = vmatprep.subr.mxu0 %v482
    %1119 = vmatpush1.msra.mxu0 %v481
    %1120 = vmatprep.subr.mxu0 %v486
    %1121 = vmatpush1.msra.mxu0 %v485
    %1122 = vmatprep.subr.mxu0 %v490
    %1123 = vmatpush1.msra.mxu0 %v489
    %1124 = vmatprep.subr.mxu0 %v494
    %1125 = vmatpush1.msra.mxu0 %v493
    %1126 = vmatprep.subr.mxu0 %v498
    %1127 = vmatpush1.msra.mxu0 %v497
    %1128 = vmatprep.subr.mxu0 %v502
    %1129 = vmatpush1.msra.mxu0 %v501
    %1130 = vmatprep.subr.mxu0 %v506
    %1131 = vmatpush1.msra.mxu0 %v505
    %1132 = vmatprep.subr.mxu0 %v510
    %1133 = vmatpush1.msra.mxu0 %v509
    %1134 = vmatprep.subr.mxu0 %v514
    %1135 = vmatpush1.msra.mxu0 %v513
    %1136 = vmatprep.subr.mxu0 0.0
    %1137 = vmatpush1.msra.mxu0 0.0
    %1138 = vmatprep.subr.mxu0 0.0
    %1139 = vmatpush1.msra.mxu0 0.0
    %1140 = vmatprep.subr.mxu0 0.0
    %1141 = vmatpush1.msra.mxu0 0.0
    %1142 = vmatprep.subr.mxu0 0.0
    %1143 = vmatpush1.msra.mxu0 0.0
    %1144 = vmatprep.subr.mxu0 0.0
    %1145 = vmatpush1.msra.mxu0 0.0
    %1146 = vmatprep.subr.mxu0 0.0
    %1147 = vmatpush1.msra.mxu0 0.0
    %1148 = vmatprep.subr.mxu0 0.0
    %1149 = vmatpush1.msra.mxu0 0.0
    %1150 = vmatprep.subr.mxu0 0.0
    %1151 = vmatpush1.msra.mxu0 0.0
    %1152 = vmatprep.subr.mxu0 0.0
    %1153 = vmatpush1.msra.mxu0 0.0
    %1154 = vmatprep.subr.mxu0 0.0
    %1155 = vmatpush1.msra.mxu0 0.0
    %1156 = vmatprep.subr.mxu0 0.0
    %1157 = vmatpush1.msra.mxu0 0.0
    %1158 = vmatprep.subr.mxu0 0.0
    %1159 = vmatpush1.msra.mxu0 0.0
    %1160 = vmatprep.subr.mxu0 0.0
    %1161 = vmatpush1.msra.mxu0 0.0
    %1162 = vmatprep.subr.mxu0 0.0
    %1163 = vmatpush1.msra.mxu0 0.0
    %1164 = vmatprep.subr.mxu0 0.0
    %1165 = vmatpush1.msra.mxu0 0.0
    %1166 = vmatprep.subr.mxu0 0.0
    %1167 = vmatpush1.msra.mxu0 0.0
    %1168 = vmatprep.mubr.f32.mxu0 0.0
    %1169 = vmatmul.mubr.f32.gmra.mrb[0].mxu0 %v1025
    %v1170 = vpop.f32.mrb[0].mxu0
    %v1171 = vadd.f32 0.0, %v1170
    %v1172 = vpop.f32.mrb[0].mxu0
    %v1173 = vadd.f32 0.0, %v1172
    %1174 = vdwg.mxu0
    %v1175 = vadd.f32 %v1029, %v1100
    %v1176 = vadd.f32 %v1030, %v1102
    %v1177 = vadd.f32 %v1031, %v1171
    %v1178 = vadd.f32 %v1032, %v1173
    %v1179 = vmul.f32 %v1175, 0.5
    %v1180 = vtanh.pop %v1179
    %v1181 = vadd.f32 %v1180, 1.0
    %v1182 = vmul.f32 %v1181, 0.5
    %v1183 = vmul.f32 %v1176, 0.5
    %v1184 = vtanh.pop %v1183
    %v1185 = vadd.f32 %v1184, 1.0
    %v1186 = vmul.f32 %v1185, 0.5
    %v1187 = vtanh.pop %v1177
    %v1188 = vmul.f32 %v1178, 0.5
    %v1189 = vtanh.pop %v1188
    %v1190 = vadd.f32 %v1189, 1.0
    %v1191 = vmul.f32 %v1190, 0.5
    %v1192 = vmul.f32 %v1186, %v1023
    %v1193 = vmul.f32 %v1182, %v1187
    %v1194 = vadd.f32 %v1192, %v1193
    %v1195 = vtanh.pop %v1194
    %v1196 = vmul.f32 %v1191, %v1195
    %s1197 = scalar_lea.vmem [#allocation14], 24
    %1198 = vst [vmem:[%s1197] sm:$0xff] %v1196
    %s1199 = scalar_lea.vmem [#allocation2], 128
    %v1200 = vld [vmem:[%s1199] sm:$0xff]
    %v1201 = vld [vmem:[%s1199 + $0x8] sm:$0xff]
    %v1202 = vld [vmem:[%s1199 + $0x10] sm:$0xff]
    %v1203 = vld [vmem:[%s1199 + $0x18] sm:$0xff]
    %1204 = vmatprep.subr.mxu0 %v452
    %1205 = vmatpush1.msra.mxu0 %v451
    %1206 = vmatprep.subr.mxu0 %v456
    %1207 = vmatpush1.msra.mxu0 %v455
    %1208 = vmatprep.subr.mxu0 %v460
    %1209 = vmatpush1.msra.mxu0 %v459
    %1210 = vmatprep.subr.mxu0 %v464
    %1211 = vmatpush1.msra.mxu0 %v463
    %1212 = vmatprep.subr.mxu0 %v468
    %1213 = vmatpush1.msra.mxu0 %v467
    %1214 = vmatprep.subr.mxu0 %v472
    %1215 = vmatpush1.msra.mxu0 %v471
    %1216 = vmatprep.subr.mxu0 %v476
    %1217 = vmatpush1.msra.mxu0 %v475
    %1218 = vmatprep.subr.mxu0 %v480
    %1219 = vmatpush1.msra.mxu0 %v479
    %1220 = vmatprep.subr.mxu0 %v484
    %1221 = vmatpush1.msra.mxu0 %v483
    %1222 = vmatprep.subr.mxu0 %v488
    %1223 = vmatpush1.msra.mxu0 %v487
    %1224 = vmatprep.subr.mxu0 %v492
    %1225 = vmatpush1.msra.mxu0 %v491
    %1226 = vmatprep.subr.mxu0 %v496
    %1227 = vmatpush1.msra.mxu0 %v495
    %1228 = vmatprep.subr.mxu0 %v500
    %1229 = vmatpush1.msra.mxu0 %v499
    %1230 = vmatprep.subr.mxu0 %v504
    %1231 = vmatpush1.msra.mxu0 %v503
    %1232 = vmatprep.subr.mxu0 %v508
    %1233 = vmatpush1.msra.mxu0 %v507
    %1234 = vmatprep.subr.mxu0 %v512
    %1235 = vmatpush1.msra.mxu0 %v511
    %1236 = vmatprep.subr.mxu0 0.0
    %1237 = vmatpush1.msra.mxu0 0.0
    %1238 = vmatprep.subr.mxu0 0.0
    %1239 = vmatpush1.msra.mxu0 0.0
    %1240 = vmatprep.subr.mxu0 0.0
    %1241 = vmatpush1.msra.mxu0 0.0
    %1242 = vmatprep.subr.mxu0 0.0
    %1243 = vmatpush1.msra.mxu0 0.0
    %1244 = vmatprep.subr.mxu0 0.0
    %1245 = vmatpush1.msra.mxu0 0.0
    %1246 = vmatprep.subr.mxu0 0.0
    %1247 = vmatpush1.msra.mxu0 0.0
    %1248 = vmatprep.subr.mxu0 0.0
    %1249 = vmatpush1.msra.mxu0 0.0
    %1250 = vmatprep.subr.mxu0 0.0
    %1251 = vmatpush1.msra.mxu0 0.0
    %1252 = vmatprep.subr.mxu0 0.0
    %1253 = vmatpush1.msra.mxu0 0.0
    %1254 = vmatprep.subr.mxu0 0.0
    %1255 = vmatpush1.msra.mxu0 0.0
    %1256 = vmatprep.subr.mxu0 0.0
    %1257 = vmatpush1.msra.mxu0 0.0
    %1258 = vmatprep.subr.mxu0 0.0
    %1259 = vmatpush1.msra.mxu0 0.0
    %1260 = vmatprep.subr.mxu0 0.0
    %1261 = vmatpush1.msra.mxu0 0.0
    %1262 = vmatprep.subr.mxu0 0.0
    %1263 = vmatpush1.msra.mxu0 0.0
    %1264 = vmatprep.subr.mxu0 0.0
    %1265 = vmatpush1.msra.mxu0 0.0
    %1266 = vmatprep.subr.mxu0 0.0
    %1267 = vmatpush1.msra.mxu0 0.0
    %1268 = vmatprep.mubr.f32.mxu0 0.0
    %1269 = vmatmul.mubr.f32.gmra.mrb[0].mxu0 %v1196
    %v1270 = vpop.f32.mrb[0].mxu0
    %v1271 = vadd.f32 0.0, %v1270
    %v1272 = vpop.f32.mrb[0].mxu0
    %v1273 = vadd.f32 0.0, %v1272
    %1274 = vdwg.mxu0
    %1275 = vmatprep.subr.mxu0 %v454
    %1276 = vmatpush1.msra.mxu0 %v453
    %1277 = vmatprep.subr.mxu0 %v458
    %1278 = vmatpush1.msra.mxu0 %v457
    %1279 = vmatprep.subr.mxu0 %v462
    %1280 = vmatpush1.msra.mxu0 %v461
    %1281 = vmatprep.subr.mxu0 %v466
    %1282 = vmatpush1.msra.mxu0 %v465
    %1283 = vmatprep.subr.mxu0 %v470
    %1284 = vmatpush1.msra.mxu0 %v469
    %1285 = vmatprep.subr.mxu0 %v474
    %1286 = vmatpush1.msra.mxu0 %v473
    %1287 = vmatprep.subr.mxu0 %v478
    %1288 = vmatpush1.msra.mxu0 %v477
    %1289 = vmatprep.subr.mxu0 %v482
    %1290 = vmatpush1.msra.mxu0 %v481
    %1291 = vmatprep.subr.mxu0 %v486
    %1292 = vmatpush1.msra.mxu0 %v485
    %1293 = vmatprep.subr.mxu0 %v490
    %1294 = vmatpush1.msra.mxu0 %v489
    %1295 = vmatprep.subr.mxu0 %v494
    %1296 = vmatpush1.msra.mxu0 %v493
    %1297 = vmatprep.subr.mxu0 %v498
    %1298 = vmatpush1.msra.mxu0 %v497
    %1299 = vmatprep.subr.mxu0 %v502
    %1300 = vmatpush1.msra.mxu0 %v501
    %1301 = vmatprep.subr.mxu0 %v506
    %1302 = vmatpush1.msra.mxu0 %v505
    %1303 = vmatprep.subr.mxu0 %v510
    %1304 = vmatpush1.msra.mxu0 %v509
    %1305 = vmatprep.subr.mxu0 %v514
    %1306 = vmatpush1.msra.mxu0 %v513
    %1307 = vmatprep.subr.mxu0 0.0
    %1308 = vmatpush1.msra.mxu0 0.0
    %1309 = vmatprep.subr.mxu0 0.0
    %1310 = vmatpush1.msra.mxu0 0.0
    %1311 = vmatprep.subr.mxu0 0.0
    %1312 = vmatpush1.msra.mxu0 0.0
    %1313 = vmatprep.subr.mxu0 0.0
    %1314 = vmatpush1.msra.mxu0 0.0
    %1315 = vmatprep.subr.mxu0 0.0
    %1316 = vmatpush1.msra.mxu0 0.0
    %1317 = vmatprep.subr.mxu0 0.0
    %1318 = vmatpush1.msra.mxu0 0.0
    %1319 = vmatprep.subr.mxu0 0.0
    %1320 = vmatpush1.msra.mxu0 0.0
    %1321 = vmatprep.subr.mxu0 0.0
    %1322 = vmatpush1.msra.mxu0 0.0
    %1323 = vmatprep.subr.mxu0 0.0
    %1324 = vmatpush1.msra.mxu0 0.0
    %1325 = vmatprep.subr.mxu0 0.0
    %1326 = vmatpush1.msra.mxu0 0.0
    %1327 = vmatprep.subr.mxu0 0.0
    %1328 = vmatpush1.msra.mxu0 0.0
    %1329 = vmatprep.subr.mxu0 0.0
    %1330 = vmatpush1.msra.mxu0 0.0
    %1331 = vmatprep.subr.mxu0 0.0
    %1332 = vmatpush1.msra.mxu0 0.0
    %1333 = vmatprep.subr.mxu0 0.0
    %1334 = vmatpush1.msra.mxu0 0.0
    %1335 = vmatprep.subr.mxu0 0.0
    %1336 = vmatpush1.msra.mxu0 0.0
    %1337 = vmatprep.subr.mxu0 0.0
    %1338 = vmatpush1.msra.mxu0 0.0
    %1339 = vmatprep.mubr.f32.mxu0 0.0
    %1340 = vmatmul.mubr.f32.gmra.mrb[0].mxu0 %v1196
    %v1341 = vpop.f32.mrb[0].mxu0
    %v1342 = vadd.f32 0.0, %v1341
    %v1343 = vpop.f32.mrb[0].mxu0
    %v1344 = vadd.f32 0.0, %v1343
    %1345 = vdwg.mxu0
    %v1346 = vadd.f32 %v1200, %v1271
    %v1347 = vadd.f32 %v1201, %v1273
    %v1348 = vadd.f32 %v1202, %v1342
    %v1349 = vadd.f32 %v1203, %v1344
    %v1350 = vmul.f32 %v1346, 0.5
    %v1351 = vtanh.pop %v1350
    %v1352 = vadd.f32 %v1351, 1.0
    %v1353 = vmul.f32 %v1352, 0.5
    %v1354 = vmul.f32 %v1347, 0.5
    %v1355 = vtanh.pop %v1354
    %v1356 = vadd.f32 %v1355, 1.0
    %v1357 = vmul.f32 %v1356, 0.5
    %v1358 = vtanh.pop %v1348
    %v1359 = vmul.f32 %v1349, 0.5
    %v1360 = vtanh.pop %v1359
    %v1361 = vadd.f32 %v1360, 1.0
    %v1362 = vmul.f32 %v1361, 0.5
    %v1363 = vmul.f32 %v1357, %v1194
    %v1364 = vmul.f32 %v1353, %v1358
    %v1365 = vadd.f32 %v1363, %v1364
    %v1366 = vtanh.pop %v1365
    %v1367 = vmul.f32 %v1362, %v1366
    %s1368 = scalar_lea.vmem [#allocation14], 32
    %1369 = vst [vmem:[%s1368] sm:$0xff] %v1367
    %s1370 = scalar_lea.vmem [#allocation2], 160
    %v1371 = vld [vmem:[%s1370] sm:$0xff]
    %v1372 = vld [vmem:[%s1370 + $0x8] sm:$0xff]
    %v1373 = vld [vmem:[%s1370 + $0x10] sm:$0xff]
    %v1374 = vld [vmem:[%s1370 + $0x18] sm:$0xff]
    %1375 = vmatprep.subr.mxu0 %v452
    %1376 = vmatpush1.msra.mxu0 %v451
    %1377 = vmatprep.subr.mxu0 %v456
    %1378 = vmatpush1.msra.mxu0 %v455
    %1379 = vmatprep.subr.mxu0 %v460
    %1380 = vmatpush1.msra.mxu0 %v459
    %1381 = vmatprep.subr.mxu0 %v464
    %1382 = vmatpush1.msra.mxu0 %v463
    %1383 = vmatprep.subr.mxu0 %v468
    %1384 = vmatpush1.msra.mxu0 %v467
    %1385 = vmatprep.subr.mxu0 %v472
    %1386 = vmatpush1.msra.mxu0 %v471
    %1387 = vmatprep.subr.mxu0 %v476
    %1388 = vmatpush1.msra.mxu0 %v475
    %1389 = vmatprep.subr.mxu0 %v480
    %1390 = vmatpush1.msra.mxu0 %v479
    %1391 = vmatprep.subr.mxu0 %v484
    %1392 = vmatpush1.msra.mxu0 %v483
    %1393 = vmatprep.subr.mxu0 %v488
    %1394 = vmatpush1.msra.mxu0 %v487
    %1395 = vmatprep.subr.mxu0 %v492
    %1396 = vmatpush1.msra.mxu0 %v491
    %1397 = vmatprep.subr.mxu0 %v496
    %1398 = vmatpush1.msra.mxu0 %v495
    %1399 = vmatprep.subr.mxu0 %v500
    %1400 = vmatpush1.msra.mxu0 %v499
    %1401 = vmatprep.subr.mxu0 %v504
    %1402 = vmatpush1.msra.mxu0 %v503
    %1403 = vmatprep.subr.mxu0 %v508
    %1404 = vmatpush1.msra.mxu0 %v507
    %1405 = vmatprep.subr.mxu0 %v512
    %1406 = vmatpush1.msra.mxu0 %v511
    %1407 = vmatprep.subr.mxu0 0.0
    %1408 = vmatpush1.msra.mxu0 0.0
    %1409 = vmatprep.subr.mxu0 0.0
    %1410 = vmatpush1.msra.mxu0 0.0
    %1411 = vmatprep.subr.mxu0 0.0
    %1412 = vmatpush1.msra.mxu0 0.0
    %1413 = vmatprep.subr.mxu0 0.0
    %1414 = vmatpush1.msra.mxu0 0.0
    %1415 = vmatprep.subr.mxu0 0.0
    %1416 = vmatpush1.msra.mxu0 0.0
    %1417 = vmatprep.subr.mxu0 0.0
    %1418 = vmatpush1.msra.mxu0 0.0
    %1419 = vmatprep.subr.mxu0 0.0
    %1420 = vmatpush1.msra.mxu0 0.0
    %1421 = vmatprep.subr.mxu0 0.0
    %1422 = vmatpush1.msra.mxu0 0.0
    %1423 = vmatprep.subr.mxu0 0.0
    %1424 = vmatpush1.msra.mxu0 0.0
    %1425 = vmatprep.subr.mxu0 0.0
    %1426 = vmatpush1.msra.mxu0 0.0
    %1427 = vmatprep.subr.mxu0 0.0
    %1428 = vmatpush1.msra.mxu0 0.0
    %1429 = vmatprep.subr.mxu0 0.0
    %1430 = vmatpush1.msra.mxu0 0.0
    %1431 = vmatprep.subr.mxu0 0.0
    %1432 = vmatpush1.msra.mxu0 0.0
    %1433 = vmatprep.subr.mxu0 0.0
    %1434 = vmatpush1.msra.mxu0 0.0
    %1435 = vmatprep.subr.mxu0 0.0
    %1436 = vmatpush1.msra.mxu0 0.0
    %1437 = vmatprep.subr.mxu0 0.0
    %1438 = vmatpush1.msra.mxu0 0.0
    %1439 = vmatprep.mubr.f32.mxu0 0.0
    %1440 = vmatmul.mubr.f32.gmra.mrb[0].mxu0 %v1367
    %v1441 = vpop.f32.mrb[0].mxu0
    %v1442 = vadd.f32 0.0, %v1441
    %v1443 = vpop.f32.mrb[0].mxu0
    %v1444 = vadd.f32 0.0, %v1443
    %1445 = vdwg.mxu0
    %1446 = vmatprep.subr.mxu0 %v454
    %1447 = vmatpush1.msra.mxu0 %v453
    %1448 = vmatprep.subr.mxu0 %v458
    %1449 = vmatpush1.msra.mxu0 %v457
    %1450 = vmatprep.subr.mxu0 %v462
    %1451 = vmatpush1.msra.mxu0 %v461
    %1452 = vmatprep.subr.mxu0 %v466
    %1453 = vmatpush1.msra.mxu0 %v465
    %1454 = vmatprep.subr.mxu0 %v470
    %1455 = vmatpush1.msra.mxu0 %v469
    %1456 = vmatprep.subr.mxu0 %v474
    %1457 = vmatpush1.msra.mxu0 %v473
    %1458 = vmatprep.subr.mxu0 %v478
    %1459 = vmatpush1.msra.mxu0 %v477
    %1460 = vmatprep.subr.mxu0 %v482
    %1461 = vmatpush1.msra.mxu0 %v481
    %1462 = vmatprep.subr.mxu0 %v486
    %1463 = vmatpush1.msra.mxu0 %v485
    %1464 = vmatprep.subr.mxu0 %v490
    %1465 = vmatpush1.msra.mxu0 %v489
    %1466 = vmatprep.subr.mxu0 %v494
    %1467 = vmatpush1.msra.mxu0 %v493
    %1468 = vmatprep.subr.mxu0 %v498
    %1469 = vmatpush1.msra.mxu0 %v497
    %1470 = vmatprep.subr.mxu0 %v502
    %1471 = vmatpush1.msra.mxu0 %v501
    %1472 = vmatprep.subr.mxu0 %v506
    %1473 = vmatpush1.msra.mxu0 %v505
    %1474 = vmatprep.subr.mxu0 %v510
    %1475 = vmatpush1.msra.mxu0 %v509
    %1476 = vmatprep.subr.mxu0 %v514
    %1477 = vmatpush1.msra.mxu0 %v513
    %1478 = vmatprep.subr.mxu0 0.0
    %1479 = vmatpush1.msra.mxu0 0.0
    %1480 = vmatprep.subr.mxu0 0.0
    %1481 = vmatpush1.msra.mxu0 0.0
    %1482 = vmatprep.subr.mxu0 0.0
    %1483 = vmatpush1.msra.mxu0 0.0
    %1484 = vmatprep.subr.mxu0 0.0
    %1485 = vmatpush1.msra.mxu0 0.0
    %1486 = vmatprep.subr.mxu0 0.0
    %1487 = vmatpush1.msra.mxu0 0.0
    %1488 = vmatprep.subr.mxu0 0.0
    %1489 = vmatpush1.msra.mxu0 0.0
    %1490 = vmatprep.subr.mxu0 0.0
    %1491 = vmatpush1.msra.mxu0 0.0
    %1492 = vmatprep.subr.mxu0 0.0
    %1493 = vmatpush1.msra.mxu0 0.0
    %1494 = vmatprep.subr.mxu0 0.0
    %1495 = vmatpush1.msra.mxu0 0.0
    %1496 = vmatprep.subr.mxu0 0.0
    %1497 = vmatpush1.msra.mxu0 0.0
    %1498 = vmatprep.subr.mxu0 0.0
    %1499 = vmatpush1.msra.mxu0 0.0
    %1500 = vmatprep.subr.mxu0 0.0
    %1501 = vmatpush1.msra.mxu0 0.0
    %1502 = vmatprep.subr.mxu0 0.0
    %1503 = vmatpush1.msra.mxu0 0.0
    %1504 = vmatprep.subr.mxu0 0.0
    %1505 = vmatpush1.msra.mxu0 0.0
    %1506 = vmatprep.subr.mxu0 0.0
    %1507 = vmatpush1.msra.mxu0 0.0
    %1508 = vmatprep.subr.mxu0 0.0
    %1509 = vmatpush1.msra.mxu0 0.0
    %1510 = vmatprep.mubr.f32.mxu0 0.0
    %1511 = vmatmul.mubr.f32.gmra.mrb[0].mxu0 %v1367
    %v1512 = vpop.f32.mrb[0].mxu0
    %v1513 = vadd.f32 0.0, %v1512
    %v1514 = vpop.f32.mrb[0].mxu0
    %v1515 = vadd.f32 0.0, %v1514
    %1516 = vdwg.mxu0
    %v1517 = vadd.f32 %v1371, %v1442
    %v1518 = vadd.f32 %v1372, %v1444
    %v1519 = vadd.f32 %v1373, %v1513
    %v1520 = vadd.f32 %v1374, %v1515
    %v1521 = vmul.f32 %v1517, 0.5
    %v1522 = vtanh.pop %v1521
    %v1523 = vadd.f32 %v1522, 1.0
    %v1524 = vmul.f32 %v1523, 0.5
    %v1525 = vmul.f32 %v1518, 0.5
    %v1526 = vtanh.pop %v1525
    %v1527 = vadd.f32 %v1526, 1.0
    %v1528 = vmul.f32 %v1527, 0.5
    %v1529 = vtanh.pop %v1519
    %v1530 = vmul.f32 %v1520, 0.5
    %v1531 = vtanh.pop %v1530
    %v1532 = vadd.f32 %v1531, 1.0
    %v1533 = vmul.f32 %v1532, 0.5
    %v1534 = vmul.f32 %v1528, %v1365
    %v1535 = vmul.f32 %v1524, %v1529
    %v1536 = vadd.f32 %v1534, %v1535
    %v1537 = vtanh.pop %v1536
    %v1538 = vmul.f32 %v1533, %v1537
    %s1539 = scalar_lea.vmem [#allocation14], 40
    %1540 = vst [vmem:[%s1539] sm:$0xff] %v1538
    %s1541 = scalar_lea.vmem [#allocation2], 192
    %v1542 = vld [vmem:[%s1541] sm:$0xff]
    %v1543 = vld [vmem:[%s1541 + $0x8] sm:$0xff]
    %v1544 = vld [vmem:[%s1541 + $0x10] sm:$0xff]
    %v1545 = vld [vmem:[%s1541 + $0x18] sm:$0xff]
    %1546 = vmatprep.subr.mxu0 %v452
    %1547 = vmatpush1.msra.mxu0 %v451
    %1548 = vmatprep.subr.mxu0 %v456
    %1549 = vmatpush1.msra.mxu0 %v455
    %1550 = vmatprep.subr.mxu0 %v460
    %1551 = vmatpush1.msra.mxu0 %v459
    %1552 = vmatprep.subr.mxu0 %v464
    %1553 = vmatpush1.msra.mxu0 %v463
    %1554 = vmatprep.subr.mxu0 %v468
    %1555 = vmatpush1.msra.mxu0 %v467
    %1556 = vmatprep.subr.mxu0 %v472
    %1557 = vmatpush1.msra.mxu0 %v471
    %1558 = vmatprep.subr.mxu0 %v476
    %1559 = vmatpush1.msra.mxu0 %v475
    %1560 = vmatprep.subr.mxu0 %v480
    %1561 = vmatpush1.msra.mxu0 %v479
    %1562 = vmatprep.subr.mxu0 %v484
    %1563 = vmatpush1.msra.mxu0 %v483
    %1564 = vmatprep.subr.mxu0 %v488
    %1565 = vmatpush1.msra.mxu0 %v487
    %1566 = vmatprep.subr.mxu0 %v492
    %1567 = vmatpush1.msra.mxu0 %v491
    %1568 = vmatprep.subr.mxu0 %v496
    %1569 = vmatpush1.msra.mxu0 %v495
    %1570 = vmatprep.subr.mxu0 %v500
    %1571 = vmatpush1.msra.mxu0 %v499
    %1572 = vmatprep.subr.mxu0 %v504
    %1573 = vmatpush1.msra.mxu0 %v503
    %1574 = vmatprep.subr.mxu0 %v508
    %1575 = vmatpush1.msra.mxu0 %v507
    %1576 = vmatprep.subr.mxu0 %v512
    %1577 = vmatpush1.msra.mxu0 %v511
    %1578 = vmatprep.subr.mxu0 0.0
    %1579 = vmatpush1.msra.mxu0 0.0
    %1580 = vmatprep.subr.mxu0 0.0
    %1581 = vmatpush1.msra.mxu0 0.0
    %1582 = vmatprep.subr.mxu0 0.0
    %1583 = vmatpush1.msra.mxu0 0.0
    %1584 = vmatprep.subr.mxu0 0.0
    %1585 = vmatpush1.msra.mxu0 0.0
    %1586 = vmatprep.subr.mxu0 0.0
    %1587 = vmatpush1.msra.mxu0 0.0
    %1588 = vmatprep.subr.mxu0 0.0
    %1589 = vmatpush1.msra.mxu0 0.0
    %1590 = vmatprep.subr.mxu0 0.0
    %1591 = vmatpush1.msra.mxu0 0.0
    %1592 = vmatprep.subr.mxu0 0.0
    %1593 = vmatpush1.msra.mxu0 0.0
    %1594 = vmatprep.subr.mxu0 0.0
    %1595 = vmatpush1.msra.mxu0 0.0
    %1596 = vmatprep.subr.mxu0 0.0
    %1597 = vmatpush1.msra.mxu0 0.0
    %1598 = vmatprep.subr.mxu0 0.0
    %1599 = vmatpush1.msra.mxu0 0.0
    %1600 = vmatprep.subr.mxu0 0.0
    %1601 = vmatpush1.msra.mxu0 0.0
    %1602 = vmatprep.subr.mxu0 0.0
    %1603 = vmatpush1.msra.mxu0 0.0
    %1604 = vmatprep.subr.mxu0 0.0
    %1605 = vmatpush1.msra.mxu0 0.0
    %1606 = vmatprep.subr.mxu0 0.0
    %1607 = vmatpush1.msra.mxu0 0.0
    %1608 = vmatprep.subr.mxu0 0.0
    %1609 = vmatpush1.msra.mxu0 0.0
    %1610 = vmatprep.mubr.f32.mxu0 0.0
    %1611 = vmatmul.mubr.f32.gmra.mrb[0].mxu0 %v1538
    %v1612 = vpop.f32.mrb[0].mxu0
    %v1613 = vadd.f32 0.0, %v1612
    %v1614 = vpop.f32.mrb[0].mxu0
    %v1615 = vadd.f32 0.0, %v1614
    %1616 = vdwg.mxu0
    %1617 = vmatprep.subr.mxu0 %v454
    %1618 = vmatpush1.msra.mxu0 %v453
    %1619 = vmatprep.subr.mxu0 %v458
    %1620 = vmatpush1.msra.mxu0 %v457
    %1621 = vmatprep.subr.mxu0 %v462
    %1622 = vmatpush1.msra.mxu0 %v461
    %1623 = vmatprep.subr.mxu0 %v466
    %1624 = vmatpush1.msra.mxu0 %v465
    %1625 = vmatprep.subr.mxu0 %v470
    %1626 = vmatpush1.msra.mxu0 %v469
    %1627 = vmatprep.subr.mxu0 %v474
    %1628 = vmatpush1.msra.mxu0 %v473
    %1629 = vmatprep.subr.mxu0 %v478
    %1630 = vmatpush1.msra.mxu0 %v477
    %1631 = vmatprep.subr.mxu0 %v482
    %1632 = vmatpush1.msra.mxu0 %v481
    %1633 = vmatprep.subr.mxu0 %v486
    %1634 = vmatpush1.msra.mxu0 %v485
    %1635 = vmatprep.subr.mxu0 %v490
    %1636 = vmatpush1.msra.mxu0 %v489
    %1637 = vmatprep.subr.mxu0 %v494
    %1638 = vmatpush1.msra.mxu0 %v493
    %1639 = vmatprep.subr.mxu0 %v498
    %1640 = vmatpush1.msra.mxu0 %v497
    %1641 = vmatprep.subr.mxu0 %v502
    %1642 = vmatpush1.msra.mxu0 %v501
    %1643 = vmatprep.subr.mxu0 %v506
    %1644 = vmatpush1.msra.mxu0 %v505
    %1645 = vmatprep.subr.mxu0 %v510
    %1646 = vmatpush1.msra.mxu0 %v509
    %1647 = vmatprep.subr.mxu0 %v514
    %1648 = vmatpush1.msra.mxu0 %v513
    %1649 = vmatprep.subr.mxu0 0.0
    %1650 = vmatpush1.msra.mxu0 0.0
    %1651 = vmatprep.subr.mxu0 0.0
    %1652 = vmatpush1.msra.mxu0 0.0
    %1653 = vmatprep.subr.mxu0 0.0
    %1654 = vmatpush1.msra.mxu0 0.0
    %1655 = vmatprep.subr.mxu0 0.0
    %1656 = vmatpush1.msra.mxu0 0.0
    %1657 = vmatprep.subr.mxu0 0.0
    %1658 = vmatpush1.msra.mxu0 0.0
    %1659 = vmatprep.subr.mxu0 0.0
    %1660 = vmatpush1.msra.mxu0 0.0
    %1661 = vmatprep.subr.mxu0 0.0
    %1662 = vmatpush1.msra.mxu0 0.0
    %1663 = vmatprep.subr.mxu0 0.0
    %1664 = vmatpush1.msra.mxu0 0.0
    %1665 = vmatprep.subr.mxu0 0.0
    %1666 = vmatpush1.msra.mxu0 0.0
    %1667 = vmatprep.subr.mxu0 0.0
    %1668 = vmatpush1.msra.mxu0 0.0
    %1669 = vmatprep.subr.mxu0 0.0
    %1670 = vmatpush1.msra.mxu0 0.0
    %1671 = vmatprep.subr.mxu0 0.0
    %1672 = vmatpush1.msra.mxu0 0.0
    %1673 = vmatprep.subr.mxu0 0.0
    %1674 = vmatpush1.msra.mxu0 0.0
    %1675 = vmatprep.subr.mxu0 0.0
    %1676 = vmatpush1.msra.mxu0 0.0
    %1677 = vmatprep.subr.mxu0 0.0
    %1678 = vmatpush1.msra.mxu0 0.0
    %1679 = vmatprep.subr.mxu0 0.0
    %1680 = vmatpush1.msra.mxu0 0.0
    %1681 = vmatprep.mubr.f32.mxu0 0.0
    %1682 = vmatmul.mubr.f32.gmra.mrb[0].mxu0 %v1538
    %v1683 = vpop.f32.mrb[0].mxu0
    %v1684 = vadd.f32 0.0, %v1683
    %v1685 = vpop.f32.mrb[0].mxu0
    %v1686 = vadd.f32 0.0, %v1685
    %1687 = vdwg.mxu0
    %v1688 = vadd.f32 %v1542, %v1613
    %v1689 = vadd.f32 %v1543, %v1615
    %v1690 = vadd.f32 %v1544, %v1684
    %v1691 = vadd.f32 %v1545, %v1686
    %v1692 = vmul.f32 %v1688, 0.5
    %v1693 = vtanh.pop %v1692
    %v1694 = vadd.f32 %v1693, 1.0
    %v1695 = vmul.f32 %v1694, 0.5
    %v1696 = vmul.f32 %v1689, 0.5
    %v1697 = vtanh.pop %v1696
    %v1698 = vadd.f32 %v1697, 1.0
    %v1699 = vmul.f32 %v1698, 0.5
    %v1700 = vtanh.pop %v1690
    %v1701 = vmul.f32 %v1691, 0.5
    %v1702 = vtanh.pop %v1701
    %v1703 = vadd.f32 %v1702, 1.0
    %v1704 = vmul.f32 %v1703, 0.5
    %v1705 = vmul.f32 %v1699, %v1536
    %v1706 = vmul.f32 %v1695, %v1700
    %v1707 = vadd.f32 %v1705, %v1706
    %v1708 = vtanh.pop %v1707
    %v1709 = vmul.f32 %v1704, %v1708
    %s1710 = scalar_lea.vmem [#allocation14], 48
    %1711 = vst [vmem:[%s1710] sm:$0xff] %v1709
    %s1712 = scalar_lea.vmem [#allocation2], 224
    %v1713 = vld [vmem:[%s1712] sm:$0xff]
    %v1714 = vld [vmem:[%s1712 + $0x8] sm:$0xff]
    %v1715 = vld [vmem:[%s1712 + $0x10] sm:$0xff]
    %v1716 = vld [vmem:[%s1712 + $0x18] sm:$0xff]
    %1717 = vmatprep.subr.mxu0 %v452
    %1718 = vmatpush1.msra.mxu0 %v451
    %1719 = vmatprep.subr.mxu0 %v456
    %1720 = vmatpush1.msra.mxu0 %v455
    %1721 = vmatprep.subr.mxu0 %v460
    %1722 = vmatpush1.msra.mxu0 %v459
    %1723 = vmatprep.subr.mxu0 %v464
    %1724 = vmatpush1.msra.mxu0 %v463
    %1725 = vmatprep.subr.mxu0 %v468
    %1726 = vmatpush1.msra.mxu0 %v467
    %1727 = vmatprep.subr.mxu0 %v472
    %1728 = vmatpush1.msra.mxu0 %v471
    %1729 = vmatprep.subr.mxu0 %v476
    %1730 = vmatpush1.msra.mxu0 %v475
    %1731 = vmatprep.subr.mxu0 %v480
    %1732 = vmatpush1.msra.mxu0 %v479
    %1733 = vmatprep.subr.mxu0 %v484
    %1734 = vmatpush1.msra.mxu0 %v483
    %1735 = vmatprep.subr.mxu0 %v488
    %1736 = vmatpush1.msra.mxu0 %v487
    %1737 = vmatprep.subr.mxu0 %v492
    %1738 = vmatpush1.msra.mxu0 %v491
    %1739 = vmatprep.subr.mxu0 %v496
    %1740 = vmatpush1.msra.mxu0 %v495
    %1741 = vmatprep.subr.mxu0 %v500
    %1742 = vmatpush1.msra.mxu0 %v499
    %1743 = vmatprep.subr.mxu0 %v504
    %1744 = vmatpush1.msra.mxu0 %v503
    %1745 = vmatprep.subr.mxu0 %v508
    %1746 = vmatpush1.msra.mxu0 %v507
    %1747 = vmatprep.subr.mxu0 %v512
    %1748 = vmatpush1.msra.mxu0 %v511
    %1749 = vmatprep.subr.mxu0 0.0
    %1750 = vmatpush1.msra.mxu0 0.0
    %1751 = vmatprep.subr.mxu0 0.0
    %1752 = vmatpush1.msra.mxu0 0.0
    %1753 = vmatprep.subr.mxu0 0.0
    %1754 = vmatpush1.msra.mxu0 0.0
    %1755 = vmatprep.subr.mxu0 0.0
    %1756 = vmatpush1.msra.mxu0 0.0
    %1757 = vmatprep.subr.mxu0 0.0
    %1758 = vmatpush1.msra.mxu0 0.0
    %1759 = vmatprep.subr.mxu0 0.0
    %1760 = vmatpush1.msra.mxu0 0.0
    %1761 = vmatprep.subr.mxu0 0.0
    %1762 = vmatpush1.msra.mxu0 0.0
    %1763 = vmatprep.subr.mxu0 0.0
    %1764 = vmatpush1.msra.mxu0 0.0
    %1765 = vmatprep.subr.mxu0 0.0
    %1766 = vmatpush1.msra.mxu0 0.0
    %1767 = vmatprep.subr.mxu0 0.0
    %1768 = vmatpush1.msra.mxu0 0.0
    %1769 = vmatprep.subr.mxu0 0.0
    %1770 = vmatpush1.msra.mxu0 0.0
    %1771 = vmatprep.subr.mxu0 0.0
    %1772 = vmatpush1.msra.mxu0 0.0
    %1773 = vmatprep.subr.mxu0 0.0
    %1774 = vmatpush1.msra.mxu0 0.0
    %1775 = vmatprep.subr.mxu0 0.0
    %1776 = vmatpush1.msra.mxu0 0.0
    %1777 = vmatprep.subr.mxu0 0.0
    %1778 = vmatpush1.msra.mxu0 0.0
    %1779 = vmatprep.subr.mxu0 0.0
    %1780 = vmatpush1.msra.mxu0 0.0
    %1781 = vmatprep.mubr.f32.mxu0 0.0
    %1782 = vmatmul.mubr.f32.gmra.mrb[0].mxu0 %v1709
    %v1783 = vpop.f32.mrb[0].mxu0
    %v1784 = vadd.f32 0.0, %v1783
    %v1785 = vpop.f32.mrb[0].mxu0
    %v1786 = vadd.f32 0.0, %v1785
    %1787 = vdwg.mxu0
    %1788 = vmatprep.subr.mxu0 %v454
    %1789 = vmatpush1.msra.mxu0 %v453
    %1790 = vmatprep.subr.mxu0 %v458
    %1791 = vmatpush1.msra.mxu0 %v457
    %1792 = vmatprep.subr.mxu0 %v462
    %1793 = vmatpush1.msra.mxu0 %v461
    %1794 = vmatprep.subr.mxu0 %v466
    %1795 = vmatpush1.msra.mxu0 %v465
    %1796 = vmatprep.subr.mxu0 %v470
    %1797 = vmatpush1.msra.mxu0 %v469
    %1798 = vmatprep.subr.mxu0 %v474
    %1799 = vmatpush1.msra.mxu0 %v473
    %1800 = vmatprep.subr.mxu0 %v478
    %1801 = vmatpush1.msra.mxu0 %v477
    %1802 = vmatprep.subr.mxu0 %v482
    %1803 = vmatpush1.msra.mxu0 %v481
    %1804 = vmatprep.subr.mxu0 %v486
    %1805 = vmatpush1.msra.mxu0 %v485
    %1806 = vmatprep.subr.mxu0 %v490
    %1807 = vmatpush1.msra.mxu0 %v489
    %1808 = vmatprep.subr.mxu0 %v494
    %1809 = vmatpush1.msra.mxu0 %v493
    %1810 = vmatprep.subr.mxu0 %v498
    %1811 = vmatpush1.msra.mxu0 %v497
    %1812 = vmatprep.subr.mxu0 %v502
    %1813 = vmatpush1.msra.mxu0 %v501
    %1814 = vmatprep.subr.mxu0 %v506
    %1815 = vmatpush1.msra.mxu0 %v505
    %1816 = vmatprep.subr.mxu0 %v510
    %1817 = vmatpush1.msra.mxu0 %v509
    %1818 = vmatprep.subr.mxu0 %v514
    %1819 = vmatpush1.msra.mxu0 %v513
    %1820 = vmatprep.subr.mxu0 0.0
    %1821 = vmatpush1.msra.mxu0 0.0
    %1822 = vmatprep.subr.mxu0 0.0
    %1823 = vmatpush1.msra.mxu0 0.0
    %1824 = vmatprep.subr.mxu0 0.0
    %1825 = vmatpush1.msra.mxu0 0.0
    %1826 = vmatprep.subr.mxu0 0.0
    %1827 = vmatpush1.msra.mxu0 0.0
    %1828 = vmatprep.subr.mxu0 0.0
    %1829 = vmatpush1.msra.mxu0 0.0
    %1830 = vmatprep.subr.mxu0 0.0
    %1831 = vmatpush1.msra.mxu0 0.0
    %1832 = vmatprep.subr.mxu0 0.0
    %1833 = vmatpush1.msra.mxu0 0.0
    %1834 = vmatprep.subr.mxu0 0.0
    %1835 = vmatpush1.msra.mxu0 0.0
    %1836 = vmatprep.subr.mxu0 0.0
    %1837 = vmatpush1.msra.mxu0 0.0
    %1838 = vmatprep.subr.mxu0 0.0
    %1839 = vmatpush1.msra.mxu0 0.0
    %1840 = vmatprep.subr.mxu0 0.0
    %1841 = vmatpush1.msra.mxu0 0.0
    %1842 = vmatprep.subr.mxu0 0.0
    %1843 = vmatpush1.msra.mxu0 0.0
    %1844 = vmatprep.subr.mxu0 0.0
    %1845 = vmatpush1.msra.mxu0 0.0
    %1846 = vmatprep.subr.mxu0 0.0
    %1847 = vmatpush1.msra.mxu0 0.0
    %1848 = vmatprep.subr.mxu0 0.0
    %1849 = vmatpush1.msra.mxu0 0.0
    %1850 = vmatprep.subr.mxu0 0.0
    %1851 = vmatpush1.msra.mxu0 0.0
    %1852 = vmatprep.mubr.f32.mxu0 0.0
    %1853 = vmatmul.mubr.f32.gmra.mrb[0].mxu0 %v1709
    %v1854 = vpop.f32.mrb[0].mxu0
    %v1855 = vadd.f32 0.0, %v1854
    %v1856 = vpop.f32.mrb[0].mxu0
    %v1857 = vadd.f32 0.0, %v1856
    %1858 = vdwg.mxu0
    %v1859 = vadd.f32 %v1713, %v1784
    %v1860 = vadd.f32 %v1714, %v1786
    %v1861 = vadd.f32 %v1715, %v1855
    %v1862 = vadd.f32 %v1716, %v1857
    %v1863 = vmul.f32 %v1859, 0.5
    %v1864 = vtanh.pop %v1863
    %v1865 = vadd.f32 %v1864, 1.0
    %v1866 = vmul.f32 %v1865, 0.5
    %v1867 = vmul.f32 %v1860, 0.5
    %v1868 = vtanh.pop %v1867
    %v1869 = vadd.f32 %v1868, 1.0
    %v1870 = vmul.f32 %v1869, 0.5
    %v1871 = vtanh.pop %v1861
    %v1872 = vmul.f32 %v1862, 0.5
    %v1873 = vtanh.pop %v1872
    %v1874 = vadd.f32 %v1873, 1.0
    %v1875 = vmul.f32 %v1874, 0.5
    %v1876 = vmul.f32 %v1870, %v1707
    %v1877 = vmul.f32 %v1866, %v1871
    %v1878 = vadd.f32 %v1876, %v1877
    %v1879 = vtanh.pop %v1878
    %v1880 = vmul.f32 %v1875, %v1879
    %s1881 = scalar_lea.vmem [#allocation14], 56
    %1882 = vst [vmem:[%s1881] sm:$0xff] %v1880
    %1883 = vst [vmem:[#allocation3] sm:$0xff] %v1880
    %1884 = vst [vmem:[#allocation4] sm:$0xff] %v1878
    // Predicated region
    $region50: #{tpu_custom_call.1} parent=1 // pred_check
      %p1885 = pneg %p91
    $region51: #{tpu_custom_call.1} parent=1 // pred_check_branch
      %1887 = sbr.rel (%p1885) target = $region53
    $region52: #{tpu_custom_call.1} parent=1 // pred_region
      %1888 = vst [vmem:[#allocation15] sm:$0xff] %v1878
    $region53: #{tpu_custom_call.1} parent=1 // pred_fallthru
      _
    // Predicated region
    $region54: #{tpu_custom_call.1} parent=1 // pred_check
      _
    $region55: #{tpu_custom_call.1} parent=1 // pred_check_branch
      %1890 = sbr.rel (0) target = $region57
    $region56: #{tpu_custom_call.1} parent=1 // pred_region
      %s1892 = ssub.s32 1024, 1024
      %1893 = vsyncadd [#allocation7], %s1892
      %s1894 = sshll.u32 [#allocation14], 4
      %s1895 = int_to_ptr.vmem [resolvable:$true] %s1894
      %1900 = dma.vmem_to_hbm [thread:$0]  %s1895, 1024, %s6, [#allocation7], 128, 128, 8
    $region57: #{tpu_custom_call.1} parent=1 // pred_fallthru
      _
    // Predicated region
    $region58: #{tpu_custom_call.1} parent=1 // pred_check
      _
    $region59: #{tpu_custom_call.1} parent=1 // pred_check_branch
      %1902 = sbr.rel (0) target = $region61
    $region60: #{tpu_custom_call.1} parent=1 // pred_region
      %s1904 = ssub.s32 128, 128
      %1905 = vsyncadd [#allocation16], %s1904
      %s1907 = sshll.u32 [#allocation15], 4
      %s1908 = int_to_ptr.vmem [resolvable:$true] %s1907
      %1910 = dma.vmem_to_hbm [thread:$0]  %s1908, 128, %s7, [#allocation16]
    $region61: #{tpu_custom_call.1} parent=1 // pred_fallthru
      _
    // Predicated region
    $region62: #{tpu_custom_call.1} parent=1 // pred_check
      _
    $region63: #{tpu_custom_call.1} parent=1 // pred_check_branch
      %1912 = sbr.rel (0) target = $region65
    $region64: #{tpu_custom_call.1} parent=1 // pred_region
      %1913 = dma.done [#allocation7], 1024
    $region65: #{tpu_custom_call.1} parent=1 // pred_fallthru
      _
    // Predicated region
    $region66: #{tpu_custom_call.1} parent=1 // pred_check
      _
    $region67: #{tpu_custom_call.1} parent=1 // pred_check_branch
      %1915 = sbr.rel (0) target = $region69
    $region68: #{tpu_custom_call.1} parent=1 // pred_region
      %1916 = dma.done [#allocation16], 128
    $region69: #{tpu_custom_call.1} parent=1 // pred_fallthru
      _
    %1917 = vsyncpa [#allocation6], 1
    %1918 = vsyncpa [#allocation9], 1
    %1919 = vsyncpa [#allocation12], 1
    %1920 = vsyncpa [#allocation7], 1
    %1921 = vsyncpa [#allocation16], 1

</llo_original>
